<compile_context>
chip_gen: v7x
topology: tpu7x:2x2x1
jax: 0.10.0
libtpu: 0.0.40
codegen_flags: <defaults>
</compile_context>

<pallas_src>
import jax
import jax.numpy as jnp
from jax.experimental import pallas as pl
from jax.experimental.pallas import tpu as pltpu

# ----------------------------- problem sizes --------------------------------
B = 2                      # batch per view
C_IN = 4                   # input channels
H = W = 16                 # spatial
REPRE_DIM = 32             # backbone feature dim
PROJ_HIDDEN = (64, 32)     # projector_hidden (scaled down from (4096, 256))
EMB_DIM = PROJ_HIDDEN[-1]
N_VIEWS = 2
NPOS_ALL = N_VIEWS * B * H * W       # 1024 conv output positions (both views)
KCOL = 9 * C_IN                      # 36 im2col columns
BN_EPS = 1e-5
L2_EPS = 1e-12
NORM_EMBED = True


# ------------------------------ fused kernel --------------------------------
def _byol_kernel(patches_ref, w36_ref, pool_ref, msel_ref,
                 pj_w1_ref, pj_g_ref, pj_b_ref, pj_m_ref, pj_v_ref, pj_w2_ref,
                 pr_w1_ref, pr_g_ref, pr_b_ref, pr_w2_ref,
                 z_ref, p_ref):
    """Whole BYOL forward for both views in one kernel invocation.

    Row layouts:
      patches : [2*B*H*W, 9*C]  (view-major, batch, position)
      feat/h1/h2/z/p : [2*B, .] rows 0..B-1 = view 1, rows B..2B-1 = view 2
    """
    # ---- backbone: 3x3 conv as ONE im2col matmul, ReLU, avg-pool on MXU ----
    h = jnp.dot(patches_ref[...], w36_ref[...],
                preferred_element_type=jnp.float32)          # [2BHW, REPRE]
    h = jnp.maximum(h, 0.0)                                  # ReLU
    feat = jnp.dot(pool_ref[...], h,
                   preferred_element_type=jnp.float32)       # [2B, REPRE]

    msel = msel_ref[...]                                     # [2B, 2B] per-view mean

    def bn_train(hh, g, b):
        # Training-mode BatchNorm1d with per-view batch stats (biased var),
        # computed via the block-diagonal view-selection matmul (already
        # broadcast to every row of its view).
        mu = jnp.dot(msel, hh, preferred_element_type=jnp.float32)
        d = hh - mu
        var = jnp.dot(msel, d * d, preferred_element_type=jnp.float32)
        return d * jax.lax.rsqrt(var + BN_EPS) * g + b

    # ---- projector: Linear -> BN -> ReLU -> Linear (shared first Linear) ---
    h1 = jnp.dot(feat, pj_w1_ref[...], preferred_element_type=jnp.float32)
    g, beta = pj_g_ref[...], pj_b_ref[...]
    h1o = jnp.maximum(bn_train(h1, g, beta), 0.0)            # online: batch stats
    h1t = jnp.maximum((h1 - pj_m_ref[...]) *                 # target: eval-mode BN
                      jax.lax.rsqrt(pj_v_ref[...] + BN_EPS) * g + beta, 0.0)
    # Batch the online + target second Linear into one MXU op, then split rows.
    yp = jnp.dot(jnp.concatenate([h1o, h1t], axis=0), pj_w2_ref[...],
                 preferred_element_type=jnp.float32)         # [4B, EMB]
    y = yp[:N_VIEWS * B]          # online projector output -> predictor
    p = yp[N_VIEWS * B:]          # target-net embeddings

    # ---- predictor (online branch only): Linear -> BN(train) -> ReLU -> Linear
    h2 = jnp.dot(y, pr_w1_ref[...], preferred_element_type=jnp.float32)
    h2n = jnp.maximum(bn_train(h2, pr_g_ref[...], pr_b_ref[...]), 0.0)
    z = jnp.dot(h2n, pr_w2_ref[...], preferred_element_type=jnp.float32)

    # ---- F.normalize(v, dim=-1, p=2): v / max(||v||, eps) via one EUP rsqrt -
    if NORM_EMBED:
        def _l2n(v):
            ss = jnp.sum(v * v, axis=-1, keepdims=True)
            return v * jax.lax.rsqrt(jnp.maximum(ss, L2_EPS * L2_EPS))
        z = _l2n(z)
        p = _l2n(p)

    z_ref[...] = z                                           # [2B, EMB]
    p_ref[...] = p                                           # [2B, EMB]


# ------------------------------ wrapper --------------------------------------
def byol_fused(patches, params):
    """patches: [2*B*H*W, 9*C_IN]. Returns (z_all, p_all), each [2*B, EMB_DIM]."""
    pj, pr = params["projector"], params["predictor"]
    args = (patches, params["w36"], params["pool"], params["msel"],
            pj["w1"], pj["gamma"], pj["beta"], pj["mean"], pj["var"], pj["w2"],
            pr["w1"], pr["gamma"], pr["beta"], pr["w2"])
    vmem = pl.BlockSpec(memory_space=pltpu.MemorySpace.VMEM)   # whole array in VMEM
    return pl.pallas_call(
        _byol_kernel,
        out_shape=(jax.ShapeDtypeStruct((N_VIEWS * B, EMB_DIM), jnp.float32),
                   jax.ShapeDtypeStruct((N_VIEWS * B, EMB_DIM), jnp.float32)),
        in_specs=[vmem] * len(args),     # no grid: single step, all weights resident
        out_specs=(vmem, vmem),
    )(*args)


def _im2col(x):
    """[B, C, H, W] -> [B*H*W, 9*C] patch rows (columns tap-major, channel-minor)."""
    xp = jnp.pad(x, ((0, 0), (0, 0), (1, 1), (1, 1)))               # [B,C,H+2,W+2]
    taps = [xp[:, :, kh:kh + H, kw:kw + W] for kh in range(3) for kw in range(3)]
    pat = jnp.stack(taps, axis=1)                                    # [B,9,C,H,W]
    return pat.transpose(0, 3, 4, 1, 2).reshape(B * H * W, KCOL)    # [BHW, 9C]


# ------------------------------ parameter init -------------------------------
def _init_mlp(key, d_in, hidden):
    h1, d_out = hidden
    k1, k2 = jax.random.split(key)
    return {
        "w1": jax.random.normal(k1, (d_in, h1), jnp.float32) / jnp.sqrt(d_in),
        "gamma": jnp.ones((1, h1), jnp.float32),
        "beta": jnp.zeros((1, h1), jnp.float32),
        "mean": jnp.zeros((1, h1), jnp.float32),   # BN running_mean (init)
        "var": jnp.ones((1, h1), jnp.float32),     # BN running_var  (init)
        "w2": jax.random.normal(k2, (h1, d_out), jnp.float32) / jnp.sqrt(h1),
    }


def init_byol_params(key):
    k_conv, k_proj, k_pred = jax.random.split(key, 3)
    w_conv = jax.random.normal(
        k_conv, (REPRE_DIM, C_IN, 3, 3), jnp.float32) / jnp.sqrt(C_IN * 9.0)
    # Constants built ONCE here (not per forward call):
    #   w36  : im2col-ordered conv weight  [9*C, REPRE_DIM]
    #   pool : block-diagonal global-average-pool matrix  [2B, 2B*H*W]
    #   msel : per-view mean-selection matrix for BN stats [2B, 2B]
    w36 = w_conv.transpose(2, 3, 1, 0).reshape(KCOL, REPRE_DIM)
    pool = jnp.kron(jnp.eye(N_VIEWS * B, dtype=jnp.float32),
                    jnp.ones((1, H * W), jnp.float32)) / float(H * W)
    msel = jnp.kron(jnp.eye(N_VIEWS, dtype=jnp.float32),
                    jnp.ones((B, B), jnp.float32)) / float(B)
    return {
        "backbone": w_conv,           # OIHW form (used by the pure-JAX reference)
        "w36": w36, "pool": pool, "msel": msel,
        "projector": _init_mlp(k_proj, REPRE_DIM, PROJ_HIDDEN),
        "predictor": _init_mlp(k_pred, PROJ_HIDDEN[-1], PROJ_HIDDEN),
        # target_net = deepcopy(online_encoder): identical weights, eval-mode BN
    }


# ------------------------------ BYOL forward ---------------------------------
@jax.jit
def byol_forward(params, x1, x2):
    # Host-side prep: im2col patches for both views, stacked view-major.
    patches = jnp.concatenate([_im2col(x1), _im2col(x2)], axis=0)   # [2BHW, 9C]
    z_all, p_all = byol_fused(patches, params)                      # [2B, EMB] x2
    z1, z2 = z_all[:B], z_all[B:]
    p1 = jax.lax.stop_gradient(p_all[:B])
    p2 = jax.lax.stop_gradient(p_all[B:])
    return z1, z2, p1, p2
    # TODO(synk): _update_target_network / update_tau are training-time state
    # updates (momentum EMA) outside forward(); not part of the kernel.


# ------------------------------ pure-JAX reference ---------------------------
def byol_reference(params, x1, x2):
    w = params["backbone"]

    def backbone(x):
        h = jax.lax.conv_general_dilated(
            x, w, window_strides=(1, 1), padding=((1, 1), (1, 1)),
            dimension_numbers=("NCHW", "OIHW", "NCHW"))
        return jnp.maximum(h, 0.0).mean(axis=(2, 3))

    def mlp(x, p, batch_stats):
        h = x @ p["w1"]
        if batch_stats:
            mu = h.mean(0, keepdims=True)
            var = ((h - mu) ** 2).mean(0, keepdims=True)
        else:
            mu, var = p["mean"], p["var"]
        h = (h - mu) * jax.lax.rsqrt(var + BN_EPS) * p["gamma"] + p["beta"]
        return jnp.maximum(h, 0.0) @ p["w2"]

    def l2n(v):
        n = jnp.linalg.norm(v, axis=-1, keepdims=True)
        return v / jnp.maximum(n, L2_EPS)

    f1, f2 = backbone(x1), backbone(x2)
    z1 = l2n(mlp(mlp(f1, params["projector"], True), params["predictor"], True))
    z2 = l2n(mlp(mlp(f2, params["projector"], True), params["predictor"], True))
    p1 = l2n(mlp(f1, params["projector"], False))
    p2 = l2n(mlp(f2, params["projector"], False))
    return z1, z2, p1, p2


if __name__ == "__main__":
    key = jax.random.PRNGKey(0)
    k_params, k_x1, k_x2 = jax.random.split(key, 3)
    params = init_byol_params(k_params)
    x1 = jax.random.normal(k_x1, (B, C_IN, H, W), jnp.float32)
    x2 = jax.random.normal(k_x2, (B, C_IN, H, W), jnp.float32)

    z1, z2, p1, p2 = byol_forward(params, x1, x2)
    jax.block_until_ready((z1, z2, p1, p2))

    assert z1.shape == (B, EMB_DIM) and p1.shape == (B, EMB_DIM)
    # normalized embeddings should have unit norm
    assert jnp.allclose(jnp.linalg.norm(z1, axis=-1), 1.0, atol=1e-4)
    assert jnp.allclose(jnp.linalg.norm(p2, axis=-1), 1.0, atol=1e-4)
    # match the pure-JAX reference forward
    rz1, rz2, rp1, rp2 = byol_reference(params, x1, x2)
    for a, b in ((z1, rz1), (z2, rz2), (p1, rp1), (p2, rp2)):
        assert jnp.allclose(a, b, atol=1e-4, rtol=1e-3)
    print("KERNEL_OK")
</pallas_src>

<mosaic_0001>
module attributes {stable_mosaic.version = 11 : i64} {
  func.func @_byol_kernel(%arg0: memref<1024x36xf32, #tpu.memory_space<vmem>>, %arg1: memref<36x32xf32, #tpu.memory_space<vmem>>, %arg2: memref<4x1024xf32, #tpu.memory_space<vmem>>, %arg3: memref<4x4xf32, #tpu.memory_space<vmem>>, %arg4: memref<32x64xf32, #tpu.memory_space<vmem>>, %arg5: memref<1x64xf32, #tpu.memory_space<vmem>>, %arg6: memref<1x64xf32, #tpu.memory_space<vmem>>, %arg7: memref<1x64xf32, #tpu.memory_space<vmem>>, %arg8: memref<1x64xf32, #tpu.memory_space<vmem>>, %arg9: memref<64x32xf32, #tpu.memory_space<vmem>>, %arg10: memref<32x64xf32, #tpu.memory_space<vmem>>, %arg11: memref<1x64xf32, #tpu.memory_space<vmem>>, %arg12: memref<1x64xf32, #tpu.memory_space<vmem>>, %arg13: memref<64x32xf32, #tpu.memory_space<vmem>>, %arg14: memref<4x32xf32, #tpu.memory_space<vmem>>, %arg15: memref<4x32xf32, #tpu.memory_space<vmem>>) attributes {dimension_semantics = [], scalar_prefetch = 0 : i64, scratch_operands = 0 : i64, tpu.core_type = #tpu.core_type<tc>} {
    %c0 = arith.constant 0 : index
    %c0_0 = arith.constant 0 : index
    %0 = vector.load %arg0[%c0, %c0_0] : memref<1024x36xf32, #tpu.memory_space<vmem>>, vector<1024x36xf32>
    %c0_1 = arith.constant 0 : index
    %c0_2 = arith.constant 0 : index
    %1 = vector.load %arg1[%c0_1, %c0_2] : memref<36x32xf32, #tpu.memory_space<vmem>>, vector<36x32xf32>
    %cst = arith.constant dense<0.000000e+00> : vector<1024x32xf32>
    %2 = tpu.matmul %0, %1, %cst {dimension_numbers = #tpu.dot_dimension_numbers<[1], [0], [0], [1], [0, 0, 1, 1], [], []>} : vector<1024x36xf32>, vector<36x32xf32>, vector<1024x32xf32> -> vector<1024x32xf32>
    %cst_3 = arith.constant 0.000000e+00 : f32
    %3 = vector.broadcast %cst_3 : f32 to vector<1024x32xf32>
    %4 = arith.maximumf %2, %3 : vector<1024x32xf32>
    %c0_4 = arith.constant 0 : index
    %c0_5 = arith.constant 0 : index
    %5 = vector.load %arg2[%c0_4, %c0_5] : memref<4x1024xf32, #tpu.memory_space<vmem>>, vector<4x1024xf32>
    %cst_6 = arith.constant dense<0.000000e+00> : vector<4x32xf32>
    %6 = tpu.matmul %5, %4, %cst_6 {dimension_numbers = #tpu.dot_dimension_numbers<[1], [0], [0], [1], [0, 0, 1, 1], [], []>} : vector<4x1024xf32>, vector<1024x32xf32>, vector<4x32xf32> -> vector<4x32xf32>
    %c0_7 = arith.constant 0 : index
    %c0_8 = arith.constant 0 : index
    %7 = vector.load %arg3[%c0_7, %c0_8] : memref<4x4xf32, #tpu.memory_space<vmem>>, vector<4x4xf32>
    %c0_9 = arith.constant 0 : index
    %c0_10 = arith.constant 0 : index
    %8 = vector.load %arg4[%c0_9, %c0_10] : memref<32x64xf32, #tpu.memory_space<vmem>>, vector<32x64xf32>
    %cst_11 = arith.constant dense<0.000000e+00> : vector<4x64xf32>
    %9 = tpu.matmul %6, %8, %cst_11 {dimension_numbers = #tpu.dot_dimension_numbers<[1], [0], [0], [1], [0, 0, 1, 1], [], []>} : vector<4x32xf32>, vector<32x64xf32>, vector<4x64xf32> -> vector<4x64xf32>
    %c0_12 = arith.constant 0 : index
    %c0_13 = arith.constant 0 : index
    %10 = vector.load %arg5[%c0_12, %c0_13] : memref<1x64xf32, #tpu.memory_space<vmem>>, vector<1x64xf32>
    %c0_14 = arith.constant 0 : index
    %c0_15 = arith.constant 0 : index
    %11 = vector.load %arg6[%c0_14, %c0_15] : memref<1x64xf32, #tpu.memory_space<vmem>>, vector<1x64xf32>
    %cst_16 = arith.constant dense<0.000000e+00> : vector<4x64xf32>
    %12 = tpu.matmul %7, %9, %cst_16 {dimension_numbers = #tpu.dot_dimension_numbers<[1], [0], [0], [1], [0, 0, 1, 1], [], []>} : vector<4x4xf32>, vector<4x64xf32>, vector<4x64xf32> -> vector<4x64xf32>
    %13 = arith.subf %9, %12 : vector<4x64xf32>
    %14 = arith.mulf %13, %13 : vector<4x64xf32>
    %cst_17 = arith.constant dense<0.000000e+00> : vector<4x64xf32>
    %15 = tpu.matmul %7, %14, %cst_17 {dimension_numbers = #tpu.dot_dimension_numbers<[1], [0], [0], [1], [0, 0, 1, 1], [], []>} : vector<4x4xf32>, vector<4x64xf32>, vector<4x64xf32> -> vector<4x64xf32>
    %cst_18 = arith.constant 9.99999974E-6 : f32
    %16 = vector.broadcast %cst_18 : f32 to vector<4x64xf32>
    %17 = arith.addf %15, %16 : vector<4x64xf32>
    %18 = math.rsqrt %17 : vector<4x64xf32>
    %19 = arith.mulf %13, %18 : vector<4x64xf32>
    %20 = vector.broadcast %10 : vector<1x64xf32> to vector<4x64xf32>
    %21 = arith.mulf %19, %20 : vector<4x64xf32>
    %22 = vector.broadcast %11 : vector<1x64xf32> to vector<4x64xf32>
    %23 = arith.addf %21, %22 : vector<4x64xf32>
    %cst_19 = arith.constant 0.000000e+00 : f32
    %24 = vector.broadcast %cst_19 : f32 to vector<4x64xf32>
    %25 = arith.maximumf %23, %24 : vector<4x64xf32>
    %c0_20 = arith.constant 0 : index
    %c0_21 = arith.constant 0 : index
    %26 = vector.load %arg7[%c0_20, %c0_21] : memref<1x64xf32, #tpu.memory_space<vmem>>, vector<1x64xf32>
    %27 = vector.broadcast %26 : vector<1x64xf32> to vector<4x64xf32>
    %28 = arith.subf %9, %27 : vector<4x64xf32>
    %c0_22 = arith.constant 0 : index
    %c0_23 = arith.constant 0 : index
    %29 = vector.load %arg8[%c0_22, %c0_23] : memref<1x64xf32, #tpu.memory_space<vmem>>, vector<1x64xf32>
    %cst_24 = arith.constant 9.99999974E-6 : f32
    %30 = vector.broadcast %cst_24 : f32 to vector<1x64xf32>
    %31 = arith.addf %29, %30 : vector<1x64xf32>
    %32 = math.rsqrt %31 : vector<1x64xf32>
    %33 = vector.broadcast %32 : vector<1x64xf32> to vector<4x64xf32>
    %34 = arith.mulf %28, %33 : vector<4x64xf32>
    %35 = vector.broadcast %10 : vector<1x64xf32> to vector<4x64xf32>
    %36 = arith.mulf %34, %35 : vector<4x64xf32>
    %37 = vector.broadcast %11 : vector<1x64xf32> to vector<4x64xf32>
    %38 = arith.addf %36, %37 : vector<4x64xf32>
    %cst_25 = arith.constant 0.000000e+00 : f32
    %39 = vector.broadcast %cst_25 : f32 to vector<4x64xf32>
    %40 = arith.maximumf %38, %39 : vector<4x64xf32>
    %41 = tpu.concatenate %25, %40 in 0 : vector<4x64xf32>, vector<4x64xf32> -> vector<8x64xf32>
    %c0_26 = arith.constant 0 : index
    %c0_27 = arith.constant 0 : index
    %42 = vector.load %arg9[%c0_26, %c0_27] : memref<64x32xf32, #tpu.memory_space<vmem>>, vector<64x32xf32>
    %cst_28 = arith.constant dense<0.000000e+00> : vector<8x32xf32>
    %43 = tpu.matmul %41, %42, %cst_28 {dimension_numbers = #tpu.dot_dimension_numbers<[1], [0], [0], [1], [0, 0, 1, 1], [], []>} : vector<8x64xf32>, vector<64x32xf32>, vector<8x32xf32> -> vector<8x32xf32>
    %44 = vector.extract_strided_slice %43 {offsets = [0, 0], sizes = [4, 32], strides = [1, 1]} : vector<8x32xf32> to vector<4x32xf32>
    %45 = vector.extract_strided_slice %43 {offsets = [4, 0], sizes = [4, 32], strides = [1, 1]} : vector<8x32xf32> to vector<4x32xf32>
    %c0_29 = arith.constant 0 : index
    %c0_30 = arith.constant 0 : index
    %46 = vector.load %arg10[%c0_29, %c0_30] : memref<32x64xf32, #tpu.memory_space<vmem>>, vector<32x64xf32>
    %cst_31 = arith.constant dense<0.000000e+00> : vector<4x64xf32>
    %47 = tpu.matmul %44, %46, %cst_31 {dimension_numbers = #tpu.dot_dimension_numbers<[1], [0], [0], [1], [0, 0, 1, 1], [], []>} : vector<4x32xf32>, vector<32x64xf32>, vector<4x64xf32> -> vector<4x64xf32>
    %c0_32 = arith.constant 0 : index
    %c0_33 = arith.constant 0 : index
    %48 = vector.load %arg11[%c0_32, %c0_33] : memref<1x64xf32, #tpu.memory_space<vmem>>, vector<1x64xf32>
    %c0_34 = arith.constant 0 : index
    %c0_35 = arith.constant 0 : index
    %49 = vector.load %arg12[%c0_34, %c0_35] : memref<1x64xf32, #tpu.memory_space<vmem>>, vector<1x64xf32>
    %cst_36 = arith.constant dense<0.000000e+00> : vector<4x64xf32>
    %50 = tpu.matmul %7, %47, %cst_36 {dimension_numbers = #tpu.dot_dimension_numbers<[1], [0], [0], [1], [0, 0, 1, 1], [], []>} : vector<4x4xf32>, vector<4x64xf32>, vector<4x64xf32> -> vector<4x64xf32>
    %51 = arith.subf %47, %50 : vector<4x64xf32>
    %52 = arith.mulf %51, %51 : vector<4x64xf32>
    %cst_37 = arith.constant dense<0.000000e+00> : vector<4x64xf32>
    %53 = tpu.matmul %7, %52, %cst_37 {dimension_numbers = #tpu.dot_dimension_numbers<[1], [0], [0], [1], [0, 0, 1, 1], [], []>} : vector<4x4xf32>, vector<4x64xf32>, vector<4x64xf32> -> vector<4x64xf32>
    %cst_38 = arith.constant 9.99999974E-6 : f32
    %54 = vector.broadcast %cst_38 : f32 to vector<4x64xf32>
    %55 = arith.addf %53, %54 : vector<4x64xf32>
    %56 = math.rsqrt %55 : vector<4x64xf32>
    %57 = arith.mulf %51, %56 : vector<4x64xf32>
    %58 = vector.broadcast %48 : vector<1x64xf32> to vector<4x64xf32>
    %59 = arith.mulf %57, %58 : vector<4x64xf32>
    %60 = vector.broadcast %49 : vector<1x64xf32> to vector<4x64xf32>
    %61 = arith.addf %59, %60 : vector<4x64xf32>
    %cst_39 = arith.constant 0.000000e+00 : f32
    %62 = vector.broadcast %cst_39 : f32 to vector<4x64xf32>
    %63 = arith.maximumf %61, %62 : vector<4x64xf32>
    %c0_40 = arith.constant 0 : index
    %c0_41 = arith.constant 0 : index
    %64 = vector.load %arg13[%c0_40, %c0_41] : memref<64x32xf32, #tpu.memory_space<vmem>>, vector<64x32xf32>
    %cst_42 = arith.constant dense<0.000000e+00> : vector<4x32xf32>
    %65 = tpu.matmul %63, %64, %cst_42 {dimension_numbers = #tpu.dot_dimension_numbers<[1], [0], [0], [1], [0, 0, 1, 1], [], []>} : vector<4x64xf32>, vector<64x32xf32>, vector<4x32xf32> -> vector<4x32xf32>
    %66 = arith.mulf %65, %65 : vector<4x32xf32>
    %cst_43 = arith.constant dense<0.000000e+00> : vector<4xf32>
    %67 = vector.multi_reduction <add>, %66, %cst_43 [1] : vector<4x32xf32> to vector<4xf32>
    %68 = vector.shape_cast %67 : vector<4xf32> to vector<4x1xf32>
    %cst_44 = arith.constant 1.000000e-24 : f32
    %69 = vector.broadcast %cst_44 : f32 to vector<4x1xf32>
    %70 = arith.maximumf %68, %69 : vector<4x1xf32>
    %71 = math.rsqrt %70 : vector<4x1xf32>
    %72 = vector.broadcast %71 : vector<4x1xf32> to vector<4x32xf32>
    %73 = arith.mulf %65, %72 : vector<4x32xf32>
    %74 = arith.mulf %45, %45 : vector<4x32xf32>
    %cst_45 = arith.constant dense<0.000000e+00> : vector<4xf32>
    %75 = vector.multi_reduction <add>, %74, %cst_45 [1] : vector<4x32xf32> to vector<4xf32>
    %76 = vector.shape_cast %75 : vector<4xf32> to vector<4x1xf32>
    %cst_46 = arith.constant 1.000000e-24 : f32
    %77 = vector.broadcast %cst_46 : f32 to vector<4x1xf32>
    %78 = arith.maximumf %76, %77 : vector<4x1xf32>
    %79 = math.rsqrt %78 : vector<4x1xf32>
    %80 = vector.broadcast %79 : vector<4x1xf32> to vector<4x32xf32>
    %81 = arith.mulf %45, %80 : vector<4x32xf32>
    %c0_47 = arith.constant 0 : index
    %c0_48 = arith.constant 0 : index
    %82 = vector.load %arg14[%c0_47, %c0_48] : memref<4x32xf32, #tpu.memory_space<vmem>>, vector<4x32xf32>
    tpu.vector_store %arg14[%c0_47, %c0_48], %73 {strides = array<i32>} : memref<4x32xf32, #tpu.memory_space<vmem>>, vector<4x32xf32>,
    %c0_49 = arith.constant 0 : index
    %c0_50 = arith.constant 0 : index
    %83 = vector.load %arg15[%c0_49, %c0_50] : memref<4x32xf32, #tpu.memory_space<vmem>>, vector<4x32xf32>
    tpu.vector_store %arg15[%c0_49, %c0_50], %81 {strides = array<i32>} : memref<4x32xf32, #tpu.memory_space<vmem>>, vector<4x32xf32>,
    return
  }
}

</mosaic_0001>

<llo_original>
// kernel: byol_forward.1
$region0: #{byol_forward.1}
  #allocation0 [shape = 'u32[]', space=smem, size = 0x4, offset = 0x4, fixed_abs, tag = 'smem constant byte address 0x4 - core index']
  #allocation1 [shape = 'u32[144,128]{1,0:T(1,128)}', space=vmem, size = 0x12000, scoped, tag = 'internal scratch']
  %s0 = inlined_call_operand.vmem [shape: f32[1024,36], index: 0, kind: input, shape index: {}]
  %s1 = inlined_call_operand.vmem [shape: f32[36,32], index: 1, kind: input, shape index: {}]
  %s2 = inlined_call_operand.vmem [shape: f32[4,1024], index: 2, kind: input, shape index: {}]
  %s3 = inlined_call_operand.vmem [shape: f32[4,4], index: 3, kind: input, shape index: {}]
  %s4 = inlined_call_operand.vmem [shape: f32[32,64], index: 4, kind: input, shape index: {}]
  %s5 = inlined_call_operand.vmem [shape: f32[1,64], index: 5, kind: input, shape index: {}]
  %s6 = inlined_call_operand.vmem [shape: f32[1,64], index: 6, kind: input, shape index: {}]
  %s7 = inlined_call_operand.vmem [shape: f32[1,64], index: 7, kind: input, shape index: {}]
  %s8 = inlined_call_operand.vmem [shape: f32[1,64], index: 8, kind: input, shape index: {}]
  %s9 = inlined_call_operand.vmem [shape: f32[64,32], index: 9, kind: input, shape index: {}]
  %s10 = inlined_call_operand.vmem [shape: f32[32,64], index: 10, kind: input, shape index: {}]
  %s11 = inlined_call_operand.vmem [shape: f32[1,64], index: 11, kind: input, shape index: {}]
  %s12 = inlined_call_operand.vmem [shape: f32[1,64], index: 12, kind: input, shape index: {}]
  %s13 = inlined_call_operand.vmem [shape: f32[64,32], index: 13, kind: input, shape index: {}]
  %s14 = inlined_call_operand.vmem [shape: f32[4,32], index: 14, kind: output, shape index: {0}]
  %s15 = inlined_call_operand.vmem [shape: f32[4,32], index: 15, kind: output, shape index: {1}]
  %16 = xla_tuple %s14, %s15
  %s17 = sld [smem:[#allocation0]]
  $region74: #{byol_forward.1} parent=0
    _
  %s19 = ssub.s32 1, %s17
  %s20 = scalar_select 0, %s19, %s17
  // Predicated region
  $region2: #{byol_forward.1} parent=0 // pred_check
    _
  $region3: #{byol_forward.1} parent=0 // pred_check_branch
    %22 = sbr.rel (0) target = $region5
  $region4: #{byol_forward.1} parent=0 // pred_region
    _
  $region5: #{byol_forward.1} parent=0 // pred_fallthru
    _
  // Predicated region
  $region6: #{byol_forward.1} parent=0 // pred_check
    _
  $region7: #{byol_forward.1} parent=0 // pred_check_branch
    %24 = sbr.rel (0) target = $region9
  $region8: #{byol_forward.1} parent=0 // pred_region
    _
  $region9: #{byol_forward.1} parent=0 // pred_fallthru
    _
  // Predicated region
  $region10: #{byol_forward.1} parent=0 // pred_check
    _
  $region11: #{byol_forward.1} parent=0 // pred_check_branch
    %26 = sbr.rel (0) target = $region13
  $region12: #{byol_forward.1} parent=0 // pred_region
    _
  $region13: #{byol_forward.1} parent=0 // pred_fallthru
    _
  // Predicated region
  $region14: #{byol_forward.1} parent=0 // pred_check
    _
  $region15: #{byol_forward.1} parent=0 // pred_check_branch
    %28 = sbr.rel (0) target = $region17
  $region16: #{byol_forward.1} parent=0 // pred_region
    _
  $region17: #{byol_forward.1} parent=0 // pred_fallthru
    _
  // Predicated region
  $region18: #{byol_forward.1} parent=0 // pred_check
    _
  $region19: #{byol_forward.1} parent=0 // pred_check_branch
    %30 = sbr.rel (0) target = $region21
  $region20: #{byol_forward.1} parent=0 // pred_region
    _
  $region21: #{byol_forward.1} parent=0 // pred_fallthru
    _
  // Predicated region
  $region22: #{byol_forward.1} parent=0 // pred_check
    _
  $region23: #{byol_forward.1} parent=0 // pred_check_branch
    %32 = sbr.rel (0) target = $region25
  $region24: #{byol_forward.1} parent=0 // pred_region
    _
  $region25: #{byol_forward.1} parent=0 // pred_fallthru
    _
  // Predicated region
  $region26: #{byol_forward.1} parent=0 // pred_check
    _
  $region27: #{byol_forward.1} parent=0 // pred_check_branch
    %34 = sbr.rel (0) target = $region29
  $region28: #{byol_forward.1} parent=0 // pred_region
    _
  $region29: #{byol_forward.1} parent=0 // pred_fallthru
    _
  // Predicated region
  $region30: #{byol_forward.1} parent=0 // pred_check
    _
  $region31: #{byol_forward.1} parent=0 // pred_check_branch
    %36 = sbr.rel (0) target = $region33
  $region32: #{byol_forward.1} parent=0 // pred_region
    _
  $region33: #{byol_forward.1} parent=0 // pred_fallthru
    _
  // Predicated region
  $region34: #{byol_forward.1} parent=0 // pred_check
    _
  $region35: #{byol_forward.1} parent=0 // pred_check_branch
    %38 = sbr.rel (0) target = $region37
  $region36: #{byol_forward.1} parent=0 // pred_region
    _
  $region37: #{byol_forward.1} parent=0 // pred_fallthru
    _
  // Predicated region
  $region38: #{byol_forward.1} parent=0 // pred_check
    _
  $region39: #{byol_forward.1} parent=0 // pred_check_branch
    %40 = sbr.rel (0) target = $region41
  $region40: #{byol_forward.1} parent=0 // pred_region
    _
  $region41: #{byol_forward.1} parent=0 // pred_fallthru
    _
  // Predicated region
  $region42: #{byol_forward.1} parent=0 // pred_check
    _
  $region43: #{byol_forward.1} parent=0 // pred_check_branch
    %42 = sbr.rel (0) target = $region45
  $region44: #{byol_forward.1} parent=0 // pred_region
    _
  $region45: #{byol_forward.1} parent=0 // pred_fallthru
    _
  // Predicated region
  $region46: #{byol_forward.1} parent=0 // pred_check
    _
  $region47: #{byol_forward.1} parent=0 // pred_check_branch
    %44 = sbr.rel (0) target = $region49
  $region48: #{byol_forward.1} parent=0 // pred_region
    _
  $region49: #{byol_forward.1} parent=0 // pred_fallthru
    _
  // Predicated region
  $region50: #{byol_forward.1} parent=0 // pred_check
    _
  $region51: #{byol_forward.1} parent=0 // pred_check_branch
    %46 = sbr.rel (0) target = $region53
  $region52: #{byol_forward.1} parent=0 // pred_region
    _
  $region53: #{byol_forward.1} parent=0 // pred_fallthru
    _
  // Predicated region
  $region54: #{byol_forward.1} parent=0 // pred_check
    _
  $region55: #{byol_forward.1} parent=0 // pred_check_branch
    %48 = sbr.rel (0) target = $region57
  $region56: #{byol_forward.1} parent=0 // pred_region
    _
  $region57: #{byol_forward.1} parent=0 // pred_fallthru
    _
  %v49 = vld [vmem:[%s0] sm:$0xff]
  %v50 = vld [vmem:[%s0 + $0x8] sm:$0xff]
  %v51 = vld [vmem:[%s0 + $0x10] sm:$0xff]
  %v52 = vld [vmem:[%s0 + $0x18] sm:$0xff]
  %v53 = vld [vmem:[%s0 + $0x20] sm:$0xff]
  %v54 = vld [vmem:[%s0 + $0x28] sm:$0xff]
  %v55 = vld [vmem:[%s0 + $0x30] sm:$0xff]
  %v56 = vld [vmem:[%s0 + $0x38] sm:$0xff]
  %v57 = vld [vmem:[%s0 + $0x40] sm:$0xff]
  %v58 = vld [vmem:[%s0 + $0x48] sm:$0xff]
  %v59 = vld [vmem:[%s0 + $0x50] sm:$0xff]
  %v60 = vld [vmem:[%s0 + $0x58] sm:$0xff]
  %v61 = vld [vmem:[%s0 + $0x60] sm:$0xff]
  %v62 = vld [vmem:[%s0 + $0x68] sm:$0xff]
  %v63 = vld [vmem:[%s0 + $0x70] sm:$0xff]
  %v64 = vld [vmem:[%s0 + $0x78] sm:$0xff]
  %v65 = vld [vmem:[%s0 + $0x80] sm:$0xff]
  %v66 = vld [vmem:[%s0 + $0x88] sm:$0xff]
  %v67 = vld [vmem:[%s0 + $0x90] sm:$0xff]
  %v68 = vld [vmem:[%s0 + $0x98] sm:$0xff]
  %v69 = vld [vmem:[%s0 + $0xa0] sm:$0xff]
  %v70 = vld [vmem:[%s0 + $0xa8] sm:$0xff]
  %v71 = vld [vmem:[%s0 + $0xb0] sm:$0xff]
  %v72 = vld [vmem:[%s0 + $0xb8] sm:$0xff]
  %v73 = vld [vmem:[%s0 + $0xc0] sm:$0xff]
  %v74 = vld [vmem:[%s0 + $0xc8] sm:$0xff]
  %v75 = vld [vmem:[%s0 + $0xd0] sm:$0xff]
  %v76 = vld [vmem:[%s0 + $0xd8] sm:$0xff]
  %v77 = vld [vmem:[%s0 + $0xe0] sm:$0xff]
  %v78 = vld [vmem:[%s0 + $0xe8] sm:$0xff]
  %v79 = vld [vmem:[%s0 + $0xf0] sm:$0xff]
  %v80 = vld [vmem:[%s0 + $0xf8] sm:$0xff]
  %v81 = vld [vmem:[%s0 + $0x100] sm:$0xff]
  %v82 = vld [vmem:[%s0 + $0x108] sm:$0xff]
  %v83 = vld [vmem:[%s0 + $0x110] sm:$0xff]
  %v84 = vld [vmem:[%s0 + $0x118] sm:$0xff]
  %v85 = vld [vmem:[%s0 + $0x120] sm:$0xff]
  %v86 = vld [vmem:[%s0 + $0x128] sm:$0xff]
  %v87 = vld [vmem:[%s0 + $0x130] sm:$0xff]
  %v88 = vld [vmem:[%s0 + $0x138] sm:$0xff]
  %v89 = vld [vmem:[%s0 + $0x140] sm:$0xff]
  %v90 = vld [vmem:[%s0 + $0x148] sm:$0xff]
  %v91 = vld [vmem:[%s0 + $0x150] sm:$0xff]
  %v92 = vld [vmem:[%s0 + $0x158] sm:$0xff]
  %v93 = vld [vmem:[%s0 + $0x160] sm:$0xff]
  %v94 = vld [vmem:[%s0 + $0x168] sm:$0xff]
  %v95 = vld [vmem:[%s0 + $0x170] sm:$0xff]
  %v96 = vld [vmem:[%s0 + $0x178] sm:$0xff]
  %v97 = vld [vmem:[%s0 + $0x180] sm:$0xff]
  %v98 = vld [vmem:[%s0 + $0x188] sm:$0xff]
  %v99 = vld [vmem:[%s0 + $0x190] sm:$0xff]
  %v100 = vld [vmem:[%s0 + $0x198] sm:$0xff]
  %v101 = vld [vmem:[%s0 + $0x1a0] sm:$0xff]
  %v102 = vld [vmem:[%s0 + $0x1a8] sm:$0xff]
  %v103 = vld [vmem:[%s0 + $0x1b0] sm:$0xff]
  %v104 = vld [vmem:[%s0 + $0x1b8] sm:$0xff]
  %v105 = vld [vmem:[%s0 + $0x1c0] sm:$0xff]
  %v106 = vld [vmem:[%s0 + $0x1c8] sm:$0xff]
  %v107 = vld [vmem:[%s0 + $0x1d0] sm:$0xff]
  %v108 = vld [vmem:[%s0 + $0x1d8] sm:$0xff]
  %v109 = vld [vmem:[%s0 + $0x1e0] sm:$0xff]
  %v110 = vld [vmem:[%s0 + $0x1e8] sm:$0xff]
  %v111 = vld [vmem:[%s0 + $0x1f0] sm:$0xff]
  %v112 = vld [vmem:[%s0 + $0x1f8] sm:$0xff]
  %v113 = vld [vmem:[%s0 + $0x200] sm:$0xff]
  %v114 = vld [vmem:[%s0 + $0x208] sm:$0xff]
  %v115 = vld [vmem:[%s0 + $0x210] sm:$0xff]
  %v116 = vld [vmem:[%s0 + $0x218] sm:$0xff]
  %v117 = vld [vmem:[%s0 + $0x220] sm:$0xff]
  %v118 = vld [vmem:[%s0 + $0x228] sm:$0xff]
  %v119 = vld [vmem:[%s0 + $0x230] sm:$0xff]
  %v120 = vld [vmem:[%s0 + $0x238] sm:$0xff]
  %v121 = vld [vmem:[%s0 + $0x240] sm:$0xff]
  %v122 = vld [vmem:[%s0 + $0x248] sm:$0xff]
  %v123 = vld [vmem:[%s0 + $0x250] sm:$0xff]
  %v124 = vld [vmem:[%s0 + $0x258] sm:$0xff]
  %v125 = vld [vmem:[%s0 + $0x260] sm:$0xff]
  %v126 = vld [vmem:[%s0 + $0x268] sm:$0xff]
  %v127 = vld [vmem:[%s0 + $0x270] sm:$0xff]
  %v128 = vld [vmem:[%s0 + $0x278] sm:$0xff]
  %v129 = vld [vmem:[%s0 + $0x280] sm:$0xff]
  %v130 = vld [vmem:[%s0 + $0x288] sm:$0xff]
  %v131 = vld [vmem:[%s0 + $0x290] sm:$0xff]
  %v132 = vld [vmem:[%s0 + $0x298] sm:$0xff]
  %v133 = vld [vmem:[%s0 + $0x2a0] sm:$0xff]
  %v134 = vld [vmem:[%s0 + $0x2a8] sm:$0xff]
  %v135 = vld [vmem:[%s0 + $0x2b0] sm:$0xff]
  %v136 = vld [vmem:[%s0 + $0x2b8] sm:$0xff]
  %v137 = vld [vmem:[%s0 + $0x2c0] sm:$0xff]
  %v138 = vld [vmem:[%s0 + $0x2c8] sm:$0xff]
  %v139 = vld [vmem:[%s0 + $0x2d0] sm:$0xff]
  %v140 = vld [vmem:[%s0 + $0x2d8] sm:$0xff]
  %v141 = vld [vmem:[%s0 + $0x2e0] sm:$0xff]
  %v142 = vld [vmem:[%s0 + $0x2e8] sm:$0xff]
  %v143 = vld [vmem:[%s0 + $0x2f0] sm:$0xff]
  %v144 = vld [vmem:[%s0 + $0x2f8] sm:$0xff]
  %v145 = vld [vmem:[%s0 + $0x300] sm:$0xff]
  %v146 = vld [vmem:[%s0 + $0x308] sm:$0xff]
  %v147 = vld [vmem:[%s0 + $0x310] sm:$0xff]
  %v148 = vld [vmem:[%s0 + $0x318] sm:$0xff]
  %v149 = vld [vmem:[%s0 + $0x320] sm:$0xff]
  %v150 = vld [vmem:[%s0 + $0x328] sm:$0xff]
  %v151 = vld [vmem:[%s0 + $0x330] sm:$0xff]
  %v152 = vld [vmem:[%s0 + $0x338] sm:$0xff]
  %v153 = vld [vmem:[%s0 + $0x340] sm:$0xff]
  %v154 = vld [vmem:[%s0 + $0x348] sm:$0xff]
  %v155 = vld [vmem:[%s0 + $0x350] sm:$0xff]
  %v156 = vld [vmem:[%s0 + $0x358] sm:$0xff]
  %v157 = vld [vmem:[%s0 + $0x360] sm:$0xff]
  %v158 = vld [vmem:[%s0 + $0x368] sm:$0xff]
  %v159 = vld [vmem:[%s0 + $0x370] sm:$0xff]
  %v160 = vld [vmem:[%s0 + $0x378] sm:$0xff]
  %v161 = vld [vmem:[%s0 + $0x380] sm:$0xff]
  %v162 = vld [vmem:[%s0 + $0x388] sm:$0xff]
  %v163 = vld [vmem:[%s0 + $0x390] sm:$0xff]
  %v164 = vld [vmem:[%s0 + $0x398] sm:$0xff]
  %v165 = vld [vmem:[%s0 + $0x3a0] sm:$0xff]
  %v166 = vld [vmem:[%s0 + $0x3a8] sm:$0xff]
  %v167 = vld [vmem:[%s0 + $0x3b0] sm:$0xff]
  %v168 = vld [vmem:[%s0 + $0x3b8] sm:$0xff]
  %v169 = vld [vmem:[%s0 + $0x3c0] sm:$0xff]
  %v170 = vld [vmem:[%s0 + $0x3c8] sm:$0xff]
  %v171 = vld [vmem:[%s0 + $0x3d0] sm:$0xff]
  %v172 = vld [vmem:[%s0 + $0x3d8] sm:$0xff]
  %v173 = vld [vmem:[%s0 + $0x3e0] sm:$0xff]
  %v174 = vld [vmem:[%s0 + $0x3e8] sm:$0xff]
  %v175 = vld [vmem:[%s0 + $0x3f0] sm:$0xff]
  %v176 = vld [vmem:[%s0 + $0x3f8] sm:$0xff]
  %v177 = vld [vmem:[%s1] sm:$0xff]
  %v178 = vld [vmem:[%s1 + $0x8] sm:$0xff]
  %v179 = vld [vmem:[%s1 + $0x10] sm:$0xff]
  %v180 = vld [vmem:[%s1 + $0x18] sm:$0xff]
  %v181 = vld [vmem:[%s1 + $0x20] sm:$0xf]
  %vm182 = vcmask 293888
  %v184 = vsel %vm182, %v49, 0
  %v187 = vsel %vm182, %v50, 0
  %v190 = vsel %vm182, %v51, 0
  %v193 = vsel %vm182, %v52, 0
  %v196 = vsel %vm182, %v53, 0
  %v199 = vsel %vm182, %v54, 0
  %v202 = vsel %vm182, %v55, 0
  %v205 = vsel %vm182, %v56, 0
  %v208 = vsel %vm182, %v57, 0
  %v211 = vsel %vm182, %v58, 0
  %v214 = vsel %vm182, %v59, 0
  %v217 = vsel %vm182, %v60, 0
  %v220 = vsel %vm182, %v61, 0
  %v223 = vsel %vm182, %v62, 0
  %v226 = vsel %vm182, %v63, 0
  %v229 = vsel %vm182, %v64, 0
  %v232 = vsel %vm182, %v65, 0
  %v235 = vsel %vm182, %v66, 0
  %v238 = vsel %vm182, %v67, 0
  %v241 = vsel %vm182, %v68, 0
  %v244 = vsel %vm182, %v69, 0
  %v247 = vsel %vm182, %v70, 0
  %v250 = vsel %vm182, %v71, 0
  %v253 = vsel %vm182, %v72, 0
  %v256 = vsel %vm182, %v73, 0
  %v259 = vsel %vm182, %v74, 0
  %v262 = vsel %vm182, %v75, 0
  %v265 = vsel %vm182, %v76, 0
  %v268 = vsel %vm182, %v77, 0
  %v271 = vsel %vm182, %v78, 0
  %v274 = vsel %vm182, %v79, 0
  %v277 = vsel %vm182, %v80, 0
  %v280 = vsel %vm182, %v81, 0
  %v283 = vsel %vm182, %v82, 0
  %v286 = vsel %vm182, %v83, 0
  %v289 = vsel %vm182, %v84, 0
  %v292 = vsel %vm182, %v85, 0
  %v295 = vsel %vm182, %v86, 0
  %v298 = vsel %vm182, %v87, 0
  %v301 = vsel %vm182, %v88, 0
  %v304 = vsel %vm182, %v89, 0
  %v307 = vsel %vm182, %v90, 0
  %v310 = vsel %vm182, %v91, 0
  %v313 = vsel %vm182, %v92, 0
  %v316 = vsel %vm182, %v93, 0
  %v319 = vsel %vm182, %v94, 0
  %v322 = vsel %vm182, %v95, 0
  %v325 = vsel %vm182, %v96, 0
  %v328 = vsel %vm182, %v97, 0
  %v331 = vsel %vm182, %v98, 0
  %v334 = vsel %vm182, %v99, 0
  %v337 = vsel %vm182, %v100, 0
  %v340 = vsel %vm182, %v101, 0
  %v343 = vsel %vm182, %v102, 0
  %v346 = vsel %vm182, %v103, 0
  %v349 = vsel %vm182, %v104, 0
  %v352 = vsel %vm182, %v105, 0
  %v355 = vsel %vm182, %v106, 0
  %v358 = vsel %vm182, %v107, 0
  %v361 = vsel %vm182, %v108, 0
  %v364 = vsel %vm182, %v109, 0
  %v367 = vsel %vm182, %v110, 0
  %v370 = vsel %vm182, %v111, 0
  %v373 = vsel %vm182, %v112, 0
  %v376 = vsel %vm182, %v113, 0
  %v379 = vsel %vm182, %v114, 0
  %v382 = vsel %vm182, %v115, 0
  %v385 = vsel %vm182, %v116, 0
  %v388 = vsel %vm182, %v117, 0
  %v391 = vsel %vm182, %v118, 0
  %v394 = vsel %vm182, %v119, 0
  %v397 = vsel %vm182, %v120, 0
  %v400 = vsel %vm182, %v121, 0
  %v403 = vsel %vm182, %v122, 0
  %v406 = vsel %vm182, %v123, 0
  %v409 = vsel %vm182, %v124, 0
  %v412 = vsel %vm182, %v125, 0
  %v415 = vsel %vm182, %v126, 0
  %v418 = vsel %vm182, %v127, 0
  %v421 = vsel %vm182, %v128, 0
  %v424 = vsel %vm182, %v129, 0
  %v427 = vsel %vm182, %v130, 0
  %v430 = vsel %vm182, %v131, 0
  %v433 = vsel %vm182, %v132, 0
  %v436 = vsel %vm182, %v133, 0
  %v439 = vsel %vm182, %v134, 0
  %v442 = vsel %vm182, %v135, 0
  %v445 = vsel %vm182, %v136, 0
  %v448 = vsel %vm182, %v137, 0
  %v451 = vsel %vm182, %v138, 0
  %v454 = vsel %vm182, %v139, 0
  %v457 = vsel %vm182, %v140, 0
  %v460 = vsel %vm182, %v141, 0
  %v463 = vsel %vm182, %v142, 0
  %v466 = vsel %vm182, %v143, 0
  %v469 = vsel %vm182, %v144, 0
  %v472 = vsel %vm182, %v145, 0
  %v475 = vsel %vm182, %v146, 0
  %v478 = vsel %vm182, %v147, 0
  %v481 = vsel %vm182, %v148, 0
  %v484 = vsel %vm182, %v149, 0
  %v487 = vsel %vm182, %v150, 0
  %v490 = vsel %vm182, %v151, 0
  %v493 = vsel %vm182, %v152, 0
  %v496 = vsel %vm182, %v153, 0
  %v499 = vsel %vm182, %v154, 0
  %v502 = vsel %vm182, %v155, 0
  %v505 = vsel %vm182, %v156, 0
  %v508 = vsel %vm182, %v157, 0
  %v511 = vsel %vm182, %v158, 0
  %v514 = vsel %vm182, %v159, 0
  %v517 = vsel %vm182, %v160, 0
  %v520 = vsel %vm182, %v161, 0
  %v523 = vsel %vm182, %v162, 0
  %v526 = vsel %vm182, %v163, 0
  %v529 = vsel %vm182, %v164, 0
  %v532 = vsel %vm182, %v165, 0
  %v535 = vsel %vm182, %v166, 0
  %v538 = vsel %vm182, %v167, 0
  %v541 = vsel %vm182, %v168, 0
  %v544 = vsel %vm182, %v169, 0
  %v547 = vsel %vm182, %v170, 0
  %v550 = vsel %vm182, %v171, 0
  %v553 = vsel %vm182, %v172, 0
  %v556 = vsel %vm182, %v173, 0
  %v559 = vsel %vm182, %v174, 0
  %v562 = vsel %vm182, %v175, 0
  %v565 = vsel %vm182, %v176, 0
  %vm567 = vcmask 1043456
  %v569 = vsel %vm567, %v181, 0
  %571 = vmatprep.subr.mxu0 0.0
  %572 = vmatpush1.msra.mxu0 %v177
  %573 = vmatprep.subr.mxu0 0.0
  %574 = vmatpush1.msra.mxu0 %v178
  %575 = vmatprep.subr.mxu0 0.0
  %576 = vmatpush1.msra.mxu0 %v179
  %577 = vmatprep.subr.mxu0 0.0
  %578 = vmatpush1.msra.mxu0 %v180
  %579 = vmatprep.subr.mxu0 0.0
  %580 = vmatpush1.msra.mxu0 %v569
  %581 = vmatprep.subr.mxu0 0.0
  %582 = vmatpush1.msra.mxu0 0.0
  %583 = vmatprep.subr.mxu0 0.0
  %584 = vmatpush1.msra.mxu0 0.0
  %585 = vmatprep.subr.mxu0 0.0
  %586 = vmatpush1.msra.mxu0 0.0
  %587 = vmatprep.subr.mxu0 0.0
  %588 = vmatpush1.msra.mxu0 0.0
  %589 = vmatprep.subr.mxu0 0.0
  %590 = vmatpush1.msra.mxu0 0.0
  %591 = vmatprep.subr.mxu0 0.0
  %592 = vmatpush1.msra.mxu0 0.0
  %593 = vmatprep.subr.mxu0 0.0
  %594 = vmatpush1.msra.mxu0 0.0
  %595 = vmatprep.subr.mxu0 0.0
  %596 = vmatpush1.msra.mxu0 0.0
  %597 = vmatprep.subr.mxu0 0.0
  %598 = vmatpush1.msra.mxu0 0.0
  %599 = vmatprep.subr.mxu0 0.0
  %600 = vmatpush1.msra.mxu0 0.0
  %601 = vmatprep.subr.mxu0 0.0
  %602 = vmatpush1.msra.mxu0 0.0
  %603 = vmatprep.subr.mxu0 0.0
  %604 = vmatpush1.msra.mxu0 0.0
  %605 = vmatprep.subr.mxu0 0.0
  %606 = vmatpush1.msra.mxu0 0.0
  %607 = vmatprep.subr.mxu0 0.0
  %608 = vmatpush1.msra.mxu0 0.0
  %609 = vmatprep.subr.mxu0 0.0
  %610 = vmatpush1.msra.mxu0 0.0
  %611 = vmatprep.subr.mxu0 0.0
  %612 = vmatpush1.msra.mxu0 0.0
  %613 = vmatprep.subr.mxu0 0.0
  %614 = vmatpush1.msra.mxu0 0.0
  %615 = vmatprep.subr.mxu0 0.0
  %616 = vmatpush1.msra.mxu0 0.0
  %617 = vmatprep.subr.mxu0 0.0
  %618 = vmatpush1.msra.mxu0 0.0
  %619 = vmatprep.subr.mxu0 0.0
  %620 = vmatpush1.msra.mxu0 0.0
  %621 = vmatprep.subr.mxu0 0.0
  %622 = vmatpush1.msra.mxu0 0.0
  %623 = vmatprep.subr.mxu0 0.0
  %624 = vmatpush1.msra.mxu0 0.0
  %625 = vmatprep.subr.mxu0 0.0
  %626 = vmatpush1.msra.mxu0 0.0
  %627 = vmatprep.subr.mxu0 0.0
  %628 = vmatpush1.msra.mxu0 0.0
  %629 = vmatprep.subr.mxu0 0.0
  %630 = vmatpush1.msra.mxu0 0.0
  %631 = vmatprep.subr.mxu0 0.0
  %632 = vmatpush1.msra.mxu0 0.0
  %633 = vmatprep.subr.mxu0 0.0
  %634 = vmatpush1.msra.mxu0 0.0
  %635 = vmatprep.mubr.f32.mxu0 0.0
  %636 = vmatmul.mubr.f32.gmra.mrb[0].mxu0 %v184
  %v637 = vpop.f32.mrb[0].mxu0
  %v638 = vadd.f32 0.0, %v637
  %v639 = vpop.f32.mrb[0].mxu0
  %640 = vmatprep.mubr.f32.mxu0 0.0
  %641 = vmatmul.mubr.f32.gmra.mrb[0].mxu0 %v187
  %v642 = vpop.f32.mrb[0].mxu0
  %v643 = vadd.f32 0.0, %v642
  %v644 = vpop.f32.mrb[0].mxu0
  %645 = vmatprep.mubr.f32.mxu0 0.0
  %646 = vmatmul.mubr.f32.gmra.mrb[0].mxu0 %v190
  %v647 = vpop.f32.mrb[0].mxu0
  %v648 = vadd.f32 0.0, %v647
  %v649 = vpop.f32.mrb[0].mxu0
  %650 = vmatprep.mubr.f32.mxu0 0.0
  %651 = vmatmul.mubr.f32.gmra.mrb[0].mxu0 %v193
  %v652 = vpop.f32.mrb[0].mxu0
  %v653 = vadd.f32 0.0, %v652
  %v654 = vpop.f32.mrb[0].mxu0
  %655 = vmatprep.mubr.f32.mxu0 0.0
  %656 = vmatmul.mubr.f32.gmra.mrb[0].mxu0 %v196
  %v657 = vpop.f32.mrb[0].mxu0
  %v658 = vadd.f32 0.0, %v657
  %v659 = vpop.f32.mrb[0].mxu0
  %660 = vmatprep.mubr.f32.mxu0 0.0
  %661 = vmatmul.mubr.f32.gmra.mrb[0].mxu0 %v199
  %v662 = vpop.f32.mrb[0].mxu0
  %v663 = vadd.f32 0.0, %v662
  %v664 = vpop.f32.mrb[0].mxu0
  %665 = vmatprep.mubr.f32.mxu0 0.0
  %666 = vmatmul.mubr.f32.gmra.mrb[0].mxu0 %v202
  %v667 = vpop.f32.mrb[0].mxu0
  %v668 = vadd.f32 0.0, %v667
  %v669 = vpop.f32.mrb[0].mxu0
  %670 = vmatprep.mubr.f32.mxu0 0.0
  %671 = vmatmul.mubr.f32.gmra.mrb[0].mxu0 %v205
  %v672 = vpop.f32.mrb[0].mxu0
  %v673 = vadd.f32 0.0, %v672
  %v674 = vpop.f32.mrb[0].mxu0
  %675 = vmatprep.mubr.f32.mxu0 0.0
  %676 = vmatmul.mubr.f32.gmra.mrb[0].mxu0 %v208
  %v677 = vpop.f32.mrb[0].mxu0
  %v678 = vadd.f32 0.0, %v677
  %v679 = vpop.f32.mrb[0].mxu0
  %680 = vmatprep.mubr.f32.mxu0 0.0
  %681 = vmatmul.mubr.f32.gmra.mrb[0].mxu0 %v211
  %v682 = vpop.f32.mrb[0].mxu0
  %v683 = vadd.f32 0.0, %v682
  %v684 = vpop.f32.mrb[0].mxu0
  %685 = vmatprep.mubr.f32.mxu0 0.0
  %686 = vmatmul.mubr.f32.gmra.mrb[0].mxu0 %v214
  %v687 = vpop.f32.mrb[0].mxu0
  %v688 = vadd.f32 0.0, %v687
  %v689 = vpop.f32.mrb[0].mxu0
  %690 = vmatprep.mubr.f32.mxu0 0.0
  %691 = vmatmul.mubr.f32.gmra.mrb[0].mxu0 %v217
  %v692 = vpop.f32.mrb[0].mxu0
  %v693 = vadd.f32 0.0, %v692
  %v694 = vpop.f32.mrb[0].mxu0
  %695 = vmatprep.mubr.f32.mxu0 0.0
  %696 = vmatmul.mubr.f32.gmra.mrb[0].mxu0 %v220
  %v697 = vpop.f32.mrb[0].mxu0
  %v698 = vadd.f32 0.0, %v697
  %v699 = vpop.f32.mrb[0].mxu0
  %700 = vmatprep.mubr.f32.mxu0 0.0
  %701 = vmatmul.mubr.f32.gmra.mrb[0].mxu0 %v223
  %v702 = vpop.f32.mrb[0].mxu0
  %v703 = vadd.f32 0.0, %v702
  %v704 = vpop.f32.mrb[0].mxu0
  %705 = vmatprep.mubr.f32.mxu0 0.0
  %706 = vmatmul.mubr.f32.gmra.mrb[0].mxu0 %v226
  %v707 = vpop.f32.mrb[0].mxu0
  %v708 = vadd.f32 0.0, %v707
  %v709 = vpop.f32.mrb[0].mxu0
  %710 = vmatprep.mubr.f32.mxu0 0.0
  %711 = vmatmul.mubr.f32.gmra.mrb[0].mxu0 %v229
  %v712 = vpop.f32.mrb[0].mxu0
  %v713 = vadd.f32 0.0, %v712
  %v714 = vpop.f32.mrb[0].mxu0
  %715 = vmatprep.mubr.f32.mxu0 0.0
  %716 = vmatmul.mubr.f32.gmra.mrb[0].mxu0 %v232
  %v717 = vpop.f32.mrb[0].mxu0
  %v718 = vadd.f32 0.0, %v717
  %v719 = vpop.f32.mrb[0].mxu0
  %720 = vmatprep.mubr.f32.mxu0 0.0
  %721 = vmatmul.mubr.f32.gmra.mrb[0].mxu0 %v235
  %v722 = vpop.f32.mrb[0].mxu0
  %v723 = vadd.f32 0.0, %v722
  %v724 = vpop.f32.mrb[0].mxu0
  %725 = vmatprep.mubr.f32.mxu0 0.0
  %726 = vmatmul.mubr.f32.gmra.mrb[0].mxu0 %v238
  %v727 = vpop.f32.mrb[0].mxu0
  %v728 = vadd.f32 0.0, %v727
  %v729 = vpop.f32.mrb[0].mxu0
  %730 = vmatprep.mubr.f32.mxu0 0.0
  %731 = vmatmul.mubr.f32.gmra.mrb[0].mxu0 %v241
  %v732 = vpop.f32.mrb[0].mxu0
  %v733 = vadd.f32 0.0, %v732
  %v734 = vpop.f32.mrb[0].mxu0
  %735 = vmatprep.mubr.f32.mxu0 0.0
  %736 = vmatmul.mubr.f32.gmra.mrb[0].mxu0 %v244
  %v737 = vpop.f32.mrb[0].mxu0
  %v738 = vadd.f32 0.0, %v737
  %v739 = vpop.f32.mrb[0].mxu0
  %740 = vmatprep.mubr.f32.mxu0 0.0
  %741 = vmatmul.mubr.f32.gmra.mrb[0].mxu0 %v247
  %v742 = vpop.f32.mrb[0].mxu0
  %v743 = vadd.f32 0.0, %v742
  %v744 = vpop.f32.mrb[0].mxu0
  %745 = vmatprep.mubr.f32.mxu0 0.0
  %746 = vmatmul.mubr.f32.gmra.mrb[0].mxu0 %v250
  %v747 = vpop.f32.mrb[0].mxu0
  %v748 = vadd.f32 0.0, %v747
  %v749 = vpop.f32.mrb[0].mxu0
  %750 = vmatprep.mubr.f32.mxu0 0.0
  %751 = vmatmul.mubr.f32.gmra.mrb[0].mxu0 %v253
  %v752 = vpop.f32.mrb[0].mxu0
  %v753 = vadd.f32 0.0, %v752
  %v754 = vpop.f32.mrb[0].mxu0
  %755 = vmatprep.mubr.f32.mxu0 0.0
  %756 = vmatmul.mubr.f32.gmra.mrb[0].mxu0 %v256
  %v757 = vpop.f32.mrb[0].mxu0
  %v758 = vadd.f32 0.0, %v757
  %v759 = vpop.f32.mrb[0].mxu0
  %760 = vmatprep.mubr.f32.mxu0 0.0
  %761 = vmatmul.mubr.f32.gmra.mrb[0].mxu0 %v259
  %v762 = vpop.f32.mrb[0].mxu0
  %v763 = vadd.f32 0.0, %v762
  %v764 = vpop.f32.mrb[0].mxu0
  %765 = vmatprep.mubr.f32.mxu0 0.0
  %766 = vmatmul.mubr.f32.gmra.mrb[0].mxu0 %v262
  %v767 = vpop.f32.mrb[0].mxu0
  %v768 = vadd.f32 0.0, %v767
  %v769 = vpop.f32.mrb[0].mxu0
  %770 = vmatprep.mubr.f32.mxu0 0.0
  %771 = vmatmul.mubr.f32.gmra.mrb[0].mxu0 %v265
  %v772 = vpop.f32.mrb[0].mxu0
  %v773 = vadd.f32 0.0, %v772
  %v774 = vpop.f32.mrb[0].mxu0
  %775 = vmatprep.mubr.f32.mxu0 0.0
  %776 = vmatmul.mubr.f32.gmra.mrb[0].mxu0 %v268
  %v777 = vpop.f32.mrb[0].mxu0
  %v778 = vadd.f32 0.0, %v777
  %v779 = vpop.f32.mrb[0].mxu0
  %780 = vmatprep.mubr.f32.mxu0 0.0
  %781 = vmatmul.mubr.f32.gmra.mrb[0].mxu0 %v271
  %v782 = vpop.f32.mrb[0].mxu0
  %v783 = vadd.f32 0.0, %v782
  %v784 = vpop.f32.mrb[0].mxu0
  %785 = vmatprep.mubr.f32.mxu0 0.0
  %786 = vmatmul.mubr.f32.gmra.mrb[0].mxu0 %v274
  %v787 = vpop.f32.mrb[0].mxu0
  %v788 = vadd.f32 0.0, %v787
  %v789 = vpop.f32.mrb[0].mxu0
  %790 = vmatprep.mubr.f32.mxu0 0.0
  %791 = vmatmul.mubr.f32.gmra.mrb[0].mxu0 %v277
  %v792 = vpop.f32.mrb[0].mxu0
  %v793 = vadd.f32 0.0, %v792
  %v794 = vpop.f32.mrb[0].mxu0
  %795 = vmatprep.mubr.f32.mxu0 0.0
  %796 = vmatmul.mubr.f32.gmra.mrb[0].mxu0 %v280
  %v797 = vpop.f32.mrb[0].mxu0
  %v798 = vadd.f32 0.0, %v797
  %v799 = vpop.f32.mrb[0].mxu0
  %800 = vmatprep.mubr.f32.mxu0 0.0
  %801 = vmatmul.mubr.f32.gmra.mrb[0].mxu0 %v283
  %v802 = vpop.f32.mrb[0].mxu0
  %v803 = vadd.f32 0.0, %v802
  %v804 = vpop.f32.mrb[0].mxu0
  %805 = vmatprep.mubr.f32.mxu0 0.0
  %806 = vmatmul.mubr.f32.gmra.mrb[0].mxu0 %v286
  %v807 = vpop.f32.mrb[0].mxu0
  %v808 = vadd.f32 0.0, %v807
  %v809 = vpop.f32.mrb[0].mxu0
  %810 = vmatprep.mubr.f32.mxu0 0.0
  %811 = vmatmul.mubr.f32.gmra.mrb[0].mxu0 %v289
  %v812 = vpop.f32.mrb[0].mxu0
  %v813 = vadd.f32 0.0, %v812
  %v814 = vpop.f32.mrb[0].mxu0
  %815 = vmatprep.mubr.f32.mxu0 0.0
  %816 = vmatmul.mubr.f32.gmra.mrb[0].mxu0 %v292
  %v817 = vpop.f32.mrb[0].mxu0
  %v818 = vadd.f32 0.0, %v817
  %v819 = vpop.f32.mrb[0].mxu0
  %820 = vmatprep.mubr.f32.mxu0 0.0
  %821 = vmatmul.mubr.f32.gmra.mrb[0].mxu0 %v295
  %v822 = vpop.f32.mrb[0].mxu0
  %v823 = vadd.f32 0.0, %v822
  %v824 = vpop.f32.mrb[0].mxu0
  %825 = vmatprep.mubr.f32.mxu0 0.0
  %826 = vmatmul.mubr.f32.gmra.mrb[0].mxu0 %v298
  %v827 = vpop.f32.mrb[0].mxu0
  %v828 = vadd.f32 0.0, %v827
  %v829 = vpop.f32.mrb[0].mxu0
  %830 = vmatprep.mubr.f32.mxu0 0.0
  %831 = vmatmul.mubr.f32.gmra.mrb[0].mxu0 %v301
  %v832 = vpop.f32.mrb[0].mxu0
  %v833 = vadd.f32 0.0, %v832
  %v834 = vpop.f32.mrb[0].mxu0
  %835 = vmatprep.mubr.f32.mxu0 0.0
  %836 = vmatmul.mubr.f32.gmra.mrb[0].mxu0 %v304
  %v837 = vpop.f32.mrb[0].mxu0
  %v838 = vadd.f32 0.0, %v837
  %v839 = vpop.f32.mrb[0].mxu0
  %840 = vmatprep.mubr.f32.mxu0 0.0
  %841 = vmatmul.mubr.f32.gmra.mrb[0].mxu0 %v307
  %v842 = vpop.f32.mrb[0].mxu0
  %v843 = vadd.f32 0.0, %v842
  %v844 = vpop.f32.mrb[0].mxu0
  %845 = vmatprep.mubr.f32.mxu0 0.0
  %846 = vmatmul.mubr.f32.gmra.mrb[0].mxu0 %v310
  %v847 = vpop.f32.mrb[0].mxu0
  %v848 = vadd.f32 0.0, %v847
  %v849 = vpop.f32.mrb[0].mxu0
  %850 = vmatprep.mubr.f32.mxu0 0.0
  %851 = vmatmul.mubr.f32.gmra.mrb[0].mxu0 %v313
  %v852 = vpop.f32.mrb[0].mxu0
  %v853 = vadd.f32 0.0, %v852
  %v854 = vpop.f32.mrb[0].mxu0
  %855 = vmatprep.mubr.f32.mxu0 0.0
  %856 = vmatmul.mubr.f32.gmra.mrb[0].mxu0 %v316
  %v857 = vpop.f32.mrb[0].mxu0
  %v858 = vadd.f32 0.0, %v857
  %v859 = vpop.f32.mrb[0].mxu0
  %860 = vmatprep.mubr.f32.mxu0 0.0
  %861 = vmatmul.mubr.f32.gmra.mrb[0].mxu0 %v319
  %v862 = vpop.f32.mrb[0].mxu0
  %v863 = vadd.f32 0.0, %v862
  %v864 = vpop.f32.mrb[0].mxu0
  %865 = vmatprep.mubr.f32.mxu0 0.0
  %866 = vmatmul.mubr.f32.gmra.mrb[0].mxu0 %v322
  %v867 = vpop.f32.mrb[0].mxu0
  %v868 = vadd.f32 0.0, %v867
  %v869 = vpop.f32.mrb[0].mxu0
  %870 = vmatprep.mubr.f32.mxu0 0.0
  %871 = vmatmul.mubr.f32.gmra.mrb[0].mxu0 %v325
  %v872 = vpop.f32.mrb[0].mxu0
  %v873 = vadd.f32 0.0, %v872
  %v874 = vpop.f32.mrb[0].mxu0
  %875 = vmatprep.mubr.f32.mxu0 0.0
  %876 = vmatmul.mubr.f32.gmra.mrb[0].mxu0 %v328
  %v877 = vpop.f32.mrb[0].mxu0
  %v878 = vadd.f32 0.0, %v877
  %v879 = vpop.f32.mrb[0].mxu0
  %880 = vmatprep.mubr.f32.mxu0 0.0
  %881 = vmatmul.mubr.f32.gmra.mrb[0].mxu0 %v331
  %v882 = vpop.f32.mrb[0].mxu0
  %v883 = vadd.f32 0.0, %v882
  %v884 = vpop.f32.mrb[0].mxu0
  %885 = vmatprep.mubr.f32.mxu0 0.0
  %886 = vmatmul.mubr.f32.gmra.mrb[0].mxu0 %v334
  %v887 = vpop.f32.mrb[0].mxu0
  %v888 = vadd.f32 0.0, %v887
  %v889 = vpop.f32.mrb[0].mxu0
  %890 = vmatprep.mubr.f32.mxu0 0.0
  %891 = vmatmul.mubr.f32.gmra.mrb[0].mxu0 %v337
  %v892 = vpop.f32.mrb[0].mxu0
  %v893 = vadd.f32 0.0, %v892
  %v894 = vpop.f32.mrb[0].mxu0
  %895 = vmatprep.mubr.f32.mxu0 0.0
  %896 = vmatmul.mubr.f32.gmra.mrb[0].mxu0 %v340
  %v897 = vpop.f32.mrb[0].mxu0
  %v898 = vadd.f32 0.0, %v897
  %v899 = vpop.f32.mrb[0].mxu0
  %900 = vmatprep.mubr.f32.mxu0 0.0
  %901 = vmatmul.mubr.f32.gmra.mrb[0].mxu0 %v343
  %v902 = vpop.f32.mrb[0].mxu0
  %v903 = vadd.f32 0.0, %v902
  %v904 = vpop.f32.mrb[0].mxu0
  %905 = vmatprep.mubr.f32.mxu0 0.0
  %906 = vmatmul.mubr.f32.gmra.mrb[0].mxu0 %v346
  %v907 = vpop.f32.mrb[0].mxu0
  %v908 = vadd.f32 0.0, %v907
  %v909 = vpop.f32.mrb[0].mxu0
  %910 = vmatprep.mubr.f32.mxu0 0.0
  %911 = vmatmul.mubr.f32.gmra.mrb[0].mxu0 %v349
  %v912 = vpop.f32.mrb[0].mxu0
  %v913 = vadd.f32 0.0, %v912
  %v914 = vpop.f32.mrb[0].mxu0
  %915 = vmatprep.mubr.f32.mxu0 0.0
  %916 = vmatmul.mubr.f32.gmra.mrb[0].mxu0 %v352
  %v917 = vpop.f32.mrb[0].mxu0
  %v918 = vadd.f32 0.0, %v917
  %v919 = vpop.f32.mrb[0].mxu0
  %920 = vmatprep.mubr.f32.mxu0 0.0
  %921 = vmatmul.mubr.f32.gmra.mrb[0].mxu0 %v355
  %v922 = vpop.f32.mrb[0].mxu0
  %v923 = vadd.f32 0.0, %v922
  %v924 = vpop.f32.mrb[0].mxu0
  %925 = vmatprep.mubr.f32.mxu0 0.0
  %926 = vmatmul.mubr.f32.gmra.mrb[0].mxu0 %v358
  %v927 = vpop.f32.mrb[0].mxu0
  %v928 = vadd.f32 0.0, %v927
  %v929 = vpop.f32.mrb[0].mxu0
  %930 = vmatprep.mubr.f32.mxu0 0.0
  %931 = vmatmul.mubr.f32.gmra.mrb[0].mxu0 %v361
  %v932 = vpop.f32.mrb[0].mxu0
  %v933 = vadd.f32 0.0, %v932
  %v934 = vpop.f32.mrb[0].mxu0
  %935 = vmatprep.mubr.f32.mxu0 0.0
  %936 = vmatmul.mubr.f32.gmra.mrb[0].mxu0 %v364
  %v937 = vpop.f32.mrb[0].mxu0
  %v938 = vadd.f32 0.0, %v937
  %v939 = vpop.f32.mrb[0].mxu0
  %940 = vmatprep.mubr.f32.mxu0 0.0
  %941 = vmatmul.mubr.f32.gmra.mrb[0].mxu0 %v367
  %v942 = vpop.f32.mrb[0].mxu0
  %v943 = vadd.f32 0.0, %v942
  %v944 = vpop.f32.mrb[0].mxu0
  %945 = vmatprep.mubr.f32.mxu0 0.0
  %946 = vmatmul.mubr.f32.gmra.mrb[0].mxu0 %v370
  %v947 = vpop.f32.mrb[0].mxu0
  %v948 = vadd.f32 0.0, %v947
  %v949 = vpop.f32.mrb[0].mxu0
  %950 = vmatprep.mubr.f32.mxu0 0.0
  %951 = vmatmul.mubr.f32.gmra.mrb[0].mxu0 %v373
  %v952 = vpop.f32.mrb[0].mxu0
  %v953 = vadd.f32 0.0, %v952
  %v954 = vpop.f32.mrb[0].mxu0
  %955 = vmatprep.mubr.f32.mxu0 0.0
  %956 = vmatmul.mubr.f32.gmra.mrb[0].mxu0 %v376
  %v957 = vpop.f32.mrb[0].mxu0
  %v958 = vadd.f32 0.0, %v957
  %v959 = vpop.f32.mrb[0].mxu0
  %960 = vmatprep.mubr.f32.mxu0 0.0
  %961 = vmatmul.mubr.f32.gmra.mrb[0].mxu0 %v379
  %v962 = vpop.f32.mrb[0].mxu0
  %v963 = vadd.f32 0.0, %v962
  %v964 = vpop.f32.mrb[0].mxu0
  %965 = vmatprep.mubr.f32.mxu0 0.0
  %966 = vmatmul.mubr.f32.gmra.mrb[0].mxu0 %v382
  %v967 = vpop.f32.mrb[0].mxu0
  %v968 = vadd.f32 0.0, %v967
  %v969 = vpop.f32.mrb[0].mxu0
  %970 = vmatprep.mubr.f32.mxu0 0.0
  %971 = vmatmul.mubr.f32.gmra.mrb[0].mxu0 %v385
  %v972 = vpop.f32.mrb[0].mxu0
  %v973 = vadd.f32 0.0, %v972
  %v974 = vpop.f32.mrb[0].mxu0
  %975 = vmatprep.mubr.f32.mxu0 0.0
  %976 = vmatmul.mubr.f32.gmra.mrb[0].mxu0 %v388
  %v977 = vpop.f32.mrb[0].mxu0
  %v978 = vadd.f32 0.0, %v977
  %v979 = vpop.f32.mrb[0].mxu0
  %980 = vmatprep.mubr.f32.mxu0 0.0
  %981 = vmatmul.mubr.f32.gmra.mrb[0].mxu0 %v391
  %v982 = vpop.f32.mrb[0].mxu0
  %v983 = vadd.f32 0.0, %v982
  %v984 = vpop.f32.mrb[0].mxu0
  %985 = vmatprep.mubr.f32.mxu0 0.0
  %986 = vmatmul.mubr.f32.gmra.mrb[0].mxu0 %v394
  %v987 = vpop.f32.mrb[0].mxu0
  %v988 = vadd.f32 0.0, %v987
  %v989 = vpop.f32.mrb[0].mxu0
  %990 = vmatprep.mubr.f32.mxu0 0.0
  %991 = vmatmul.mubr.f32.gmra.mrb[0].mxu0 %v397
  %v992 = vpop.f32.mrb[0].mxu0
  %v993 = vadd.f32 0.0, %v992
  %v994 = vpop.f32.mrb[0].mxu0
  %995 = vmatprep.mubr.f32.mxu0 0.0
  %996 = vmatmul.mubr.f32.gmra.mrb[0].mxu0 %v400
  %v997 = vpop.f32.mrb[0].mxu0
  %v998 = vadd.f32 0.0, %v997
  %v999 = vpop.f32.mrb[0].mxu0
  %1000 = vmatprep.mubr.f32.mxu0 0.0
  %1001 = vmatmul.mubr.f32.gmra.mrb[0].mxu0 %v403
  %v1002 = vpop.f32.mrb[0].mxu0
  %v1003 = vadd.f32 0.0, %v1002
  %v1004 = vpop.f32.mrb[0].mxu0
  %1005 = vmatprep.mubr.f32.mxu0 0.0
  %1006 = vmatmul.mubr.f32.gmra.mrb[0].mxu0 %v406
  %v1007 = vpop.f32.mrb[0].mxu0
  %v1008 = vadd.f32 0.0, %v1007
  %v1009 = vpop.f32.mrb[0].mxu0
  %1010 = vmatprep.mubr.f32.mxu0 0.0
  %1011 = vmatmul.mubr.f32.gmra.mrb[0].mxu0 %v409
  %v1012 = vpop.f32.mrb[0].mxu0
  %v1013 = vadd.f32 0.0, %v1012
  %v1014 = vpop.f32.mrb[0].mxu0
  %1015 = vmatprep.mubr.f32.mxu0 0.0
  %1016 = vmatmul.mubr.f32.gmra.mrb[0].mxu0 %v412
  %v1017 = vpop.f32.mrb[0].mxu0
  %v1018 = vadd.f32 0.0, %v1017
  %v1019 = vpop.f32.mrb[0].mxu0
  %1020 = vmatprep.mubr.f32.mxu0 0.0
  %1021 = vmatmul.mubr.f32.gmra.mrb[0].mxu0 %v415
  %v1022 = vpop.f32.mrb[0].mxu0
  %v1023 = vadd.f32 0.0, %v1022
  %v1024 = vpop.f32.mrb[0].mxu0
  %1025 = vmatprep.mubr.f32.mxu0 0.0
  %1026 = vmatmul.mubr.f32.gmra.mrb[0].mxu0 %v418
  %v1027 = vpop.f32.mrb[0].mxu0
  %v1028 = vadd.f32 0.0, %v1027
  %v1029 = vpop.f32.mrb[0].mxu0
  %1030 = vmatprep.mubr.f32.mxu0 0.0
  %1031 = vmatmul.mubr.f32.gmra.mrb[0].mxu0 %v421
  %v1032 = vpop.f32.mrb[0].mxu0
  %v1033 = vadd.f32 0.0, %v1032
  %v1034 = vpop.f32.mrb[0].mxu0
  %1035 = vmatprep.mubr.f32.mxu0 0.0
  %1036 = vmatmul.mubr.f32.gmra.mrb[0].mxu0 %v424
  %v1037 = vpop.f32.mrb[0].mxu0
  %v1038 = vadd.f32 0.0, %v1037
  %v1039 = vpop.f32.mrb[0].mxu0
  %1040 = vmatprep.mubr.f32.mxu0 0.0
  %1041 = vmatmul.mubr.f32.gmra.mrb[0].mxu0 %v427
  %v1042 = vpop.f32.mrb[0].mxu0
  %v1043 = vadd.f32 0.0, %v1042
  %v1044 = vpop.f32.mrb[0].mxu0
  %1045 = vmatprep.mubr.f32.mxu0 0.0
  %1046 = vmatmul.mubr.f32.gmra.mrb[0].mxu0 %v430
  %v1047 = vpop.f32.mrb[0].mxu0
  %v1048 = vadd.f32 0.0, %v1047
  %v1049 = vpop.f32.mrb[0].mxu0
  %1050 = vmatprep.mubr.f32.mxu0 0.0
  %1051 = vmatmul.mubr.f32.gmra.mrb[0].mxu0 %v433
  %v1052 = vpop.f32.mrb[0].mxu0
  %v1053 = vadd.f32 0.0, %v1052
  %v1054 = vpop.f32.mrb[0].mxu0
  %1055 = vmatprep.mubr.f32.mxu0 0.0
  %1056 = vmatmul.mubr.f32.gmra.mrb[0].mxu0 %v436
  %v1057 = vpop.f32.mrb[0].mxu0
  %v1058 = vadd.f32 0.0, %v1057
  %v1059 = vpop.f32.mrb[0].mxu0
  %1060 = vmatprep.mubr.f32.mxu0 0.0
  %1061 = vmatmul.mubr.f32.gmra.mrb[0].mxu0 %v439
  %v1062 = vpop.f32.mrb[0].mxu0
  %v1063 = vadd.f32 0.0, %v1062
  %v1064 = vpop.f32.mrb[0].mxu0
  %1065 = vmatprep.mubr.f32.mxu0 0.0
  %1066 = vmatmul.mubr.f32.gmra.mrb[0].mxu0 %v442
  %v1067 = vpop.f32.mrb[0].mxu0
  %v1068 = vadd.f32 0.0, %v1067
  %v1069 = vpop.f32.mrb[0].mxu0
  %1070 = vmatprep.mubr.f32.mxu0 0.0
  %1071 = vmatmul.mubr.f32.gmra.mrb[0].mxu0 %v445
  %v1072 = vpop.f32.mrb[0].mxu0
  %v1073 = vadd.f32 0.0, %v1072
  %v1074 = vpop.f32.mrb[0].mxu0
  %1075 = vmatprep.mubr.f32.mxu0 0.0
  %1076 = vmatmul.mubr.f32.gmra.mrb[0].mxu0 %v448
  %v1077 = vpop.f32.mrb[0].mxu0
  %v1078 = vadd.f32 0.0, %v1077
  %v1079 = vpop.f32.mrb[0].mxu0
  %1080 = vmatprep.mubr.f32.mxu0 0.0
  %1081 = vmatmul.mubr.f32.gmra.mrb[0].mxu0 %v451
  %v1082 = vpop.f32.mrb[0].mxu0
  %v1083 = vadd.f32 0.0, %v1082
  %v1084 = vpop.f32.mrb[0].mxu0
  %1085 = vmatprep.mubr.f32.mxu0 0.0
  %1086 = vmatmul.mubr.f32.gmra.mrb[0].mxu0 %v454
  %v1087 = vpop.f32.mrb[0].mxu0
  %v1088 = vadd.f32 0.0, %v1087
  %v1089 = vpop.f32.mrb[0].mxu0
  %1090 = vmatprep.mubr.f32.mxu0 0.0
  %1091 = vmatmul.mubr.f32.gmra.mrb[0].mxu0 %v457
  %v1092 = vpop.f32.mrb[0].mxu0
  %v1093 = vadd.f32 0.0, %v1092
  %v1094 = vpop.f32.mrb[0].mxu0
  %1095 = vmatprep.mubr.f32.mxu0 0.0
  %1096 = vmatmul.mubr.f32.gmra.mrb[0].mxu0 %v460
  %v1097 = vpop.f32.mrb[0].mxu0
  %v1098 = vadd.f32 0.0, %v1097
  %v1099 = vpop.f32.mrb[0].mxu0
  %1100 = vmatprep.mubr.f32.mxu0 0.0
  %1101 = vmatmul.mubr.f32.gmra.mrb[0].mxu0 %v463
  %v1102 = vpop.f32.mrb[0].mxu0
  %v1103 = vadd.f32 0.0, %v1102
  %v1104 = vpop.f32.mrb[0].mxu0
  %1105 = vmatprep.mubr.f32.mxu0 0.0
  %1106 = vmatmul.mubr.f32.gmra.mrb[0].mxu0 %v466
  %v1107 = vpop.f32.mrb[0].mxu0
  %v1108 = vadd.f32 0.0, %v1107
  %v1109 = vpop.f32.mrb[0].mxu0
  %1110 = vmatprep.mubr.f32.mxu0 0.0
  %1111 = vmatmul.mubr.f32.gmra.mrb[0].mxu0 %v469
  %v1112 = vpop.f32.mrb[0].mxu0
  %v1113 = vadd.f32 0.0, %v1112
  %v1114 = vpop.f32.mrb[0].mxu0
  %1115 = vmatprep.mubr.f32.mxu0 0.0
  %1116 = vmatmul.mubr.f32.gmra.mrb[0].mxu0 %v472
  %v1117 = vpop.f32.mrb[0].mxu0
  %v1118 = vadd.f32 0.0, %v1117
  %v1119 = vpop.f32.mrb[0].mxu0
  %1120 = vmatprep.mubr.f32.mxu0 0.0
  %1121 = vmatmul.mubr.f32.gmra.mrb[0].mxu0 %v475
  %v1122 = vpop.f32.mrb[0].mxu0
  %v1123 = vadd.f32 0.0, %v1122
  %v1124 = vpop.f32.mrb[0].mxu0
  %1125 = vmatprep.mubr.f32.mxu0 0.0
  %1126 = vmatmul.mubr.f32.gmra.mrb[0].mxu0 %v478
  %v1127 = vpop.f32.mrb[0].mxu0
  %v1128 = vadd.f32 0.0, %v1127
  %v1129 = vpop.f32.mrb[0].mxu0
  %1130 = vmatprep.mubr.f32.mxu0 0.0
  %1131 = vmatmul.mubr.f32.gmra.mrb[0].mxu0 %v481
  %v1132 = vpop.f32.mrb[0].mxu0
  %v1133 = vadd.f32 0.0, %v1132
  %v1134 = vpop.f32.mrb[0].mxu0
  %1135 = vmatprep.mubr.f32.mxu0 0.0
  %1136 = vmatmul.mubr.f32.gmra.mrb[0].mxu0 %v484
  %v1137 = vpop.f32.mrb[0].mxu0
  %v1138 = vadd.f32 0.0, %v1137
  %v1139 = vpop.f32.mrb[0].mxu0
  %1140 = vmatprep.mubr.f32.mxu0 0.0
  %1141 = vmatmul.mubr.f32.gmra.mrb[0].mxu0 %v487
  %v1142 = vpop.f32.mrb[0].mxu0
  %v1143 = vadd.f32 0.0, %v1142
  %v1144 = vpop.f32.mrb[0].mxu0
  %1145 = vmatprep.mubr.f32.mxu0 0.0
  %1146 = vmatmul.mubr.f32.gmra.mrb[0].mxu0 %v490
  %v1147 = vpop.f32.mrb[0].mxu0
  %v1148 = vadd.f32 0.0, %v1147
  %v1149 = vpop.f32.mrb[0].mxu0
  %1150 = vmatprep.mubr.f32.mxu0 0.0
  %1151 = vmatmul.mubr.f32.gmra.mrb[0].mxu0 %v493
  %v1152 = vpop.f32.mrb[0].mxu0
  %v1153 = vadd.f32 0.0, %v1152
  %v1154 = vpop.f32.mrb[0].mxu0
  %1155 = vmatprep.mubr.f32.mxu0 0.0
  %1156 = vmatmul.mubr.f32.gmra.mrb[0].mxu0 %v496
  %v1157 = vpop.f32.mrb[0].mxu0
  %v1158 = vadd.f32 0.0, %v1157
  %v1159 = vpop.f32.mrb[0].mxu0
  %1160 = vmatprep.mubr.f32.mxu0 0.0
  %1161 = vmatmul.mubr.f32.gmra.mrb[0].mxu0 %v499
  %v1162 = vpop.f32.mrb[0].mxu0
  %v1163 = vadd.f32 0.0, %v1162
  %v1164 = vpop.f32.mrb[0].mxu0
  %1165 = vmatprep.mubr.f32.mxu0 0.0
  %1166 = vmatmul.mubr.f32.gmra.mrb[0].mxu0 %v502
  %v1167 = vpop.f32.mrb[0].mxu0
  %v1168 = vadd.f32 0.0, %v1167
  %v1169 = vpop.f32.mrb[0].mxu0
  %1170 = vmatprep.mubr.f32.mxu0 0.0
  %1171 = vmatmul.mubr.f32.gmra.mrb[0].mxu0 %v505
  %v1172 = vpop.f32.mrb[0].mxu0
  %v1173 = vadd.f32 0.0, %v1172
  %v1174 = vpop.f32.mrb[0].mxu0
  %1175 = vmatprep.mubr.f32.mxu0 0.0
  %1176 = vmatmul.mubr.f32.gmra.mrb[0].mxu0 %v508
  %v1177 = vpop.f32.mrb[0].mxu0
  %v1178 = vadd.f32 0.0, %v1177
  %v1179 = vpop.f32.mrb[0].mxu0
  %1180 = vmatprep.mubr.f32.mxu0 0.0
  %1181 = vmatmul.mubr.f32.gmra.mrb[0].mxu0 %v511
  %v1182 = vpop.f32.mrb[0].mxu0
  %v1183 = vadd.f32 0.0, %v1182
  %v1184 = vpop.f32.mrb[0].mxu0
  %1185 = vmatprep.mubr.f32.mxu0 0.0
  %1186 = vmatmul.mubr.f32.gmra.mrb[0].mxu0 %v514
  %v1187 = vpop.f32.mrb[0].mxu0
  %v1188 = vadd.f32 0.0, %v1187
  %v1189 = vpop.f32.mrb[0].mxu0
  %1190 = vmatprep.mubr.f32.mxu0 0.0
  %1191 = vmatmul.mubr.f32.gmra.mrb[0].mxu0 %v517
  %v1192 = vpop.f32.mrb[0].mxu0
  %v1193 = vadd.f32 0.0, %v1192
  %v1194 = vpop.f32.mrb[0].mxu0
  %1195 = vmatprep.mubr.f32.mxu0 0.0
  %1196 = vmatmul.mubr.f32.gmra.mrb[0].mxu0 %v520
  %v1197 = vpop.f32.mrb[0].mxu0
  %v1198 = vadd.f32 0.0, %v1197
  %v1199 = vpop.f32.mrb[0].mxu0
  %1200 = vmatprep.mubr.f32.mxu0 0.0
  %1201 = vmatmul.mubr.f32.gmra.mrb[0].mxu0 %v523
  %v1202 = vpop.f32.mrb[0].mxu0
  %v1203 = vadd.f32 0.0, %v1202
  %v1204 = vpop.f32.mrb[0].mxu0
  %1205 = vmatprep.mubr.f32.mxu0 0.0
  %1206 = vmatmul.mubr.f32.gmra.mrb[0].mxu0 %v526
  %v1207 = vpop.f32.mrb[0].mxu0
  %v1208 = vadd.f32 0.0, %v1207
  %v1209 = vpop.f32.mrb[0].mxu0
  %1210 = vmatprep.mubr.f32.mxu0 0.0
  %1211 = vmatmul.mubr.f32.gmra.mrb[0].mxu0 %v529
  %v1212 = vpop.f32.mrb[0].mxu0
  %v1213 = vadd.f32 0.0, %v1212
  %v1214 = vpop.f32.mrb[0].mxu0
  %1215 = vmatprep.mubr.f32.mxu0 0.0
  %1216 = vmatmul.mubr.f32.gmra.mrb[0].mxu0 %v532
  %v1217 = vpop.f32.mrb[0].mxu0
  %v1218 = vadd.f32 0.0, %v1217
  %v1219 = vpop.f32.mrb[0].mxu0
  %1220 = vmatprep.mubr.f32.mxu0 0.0
  %1221 = vmatmul.mubr.f32.gmra.mrb[0].mxu0 %v535
  %v1222 = vpop.f32.mrb[0].mxu0
  %v1223 = vadd.f32 0.0, %v1222
  %v1224 = vpop.f32.mrb[0].mxu0
  %1225 = vmatprep.mubr.f32.mxu0 0.0
  %1226 = vmatmul.mubr.f32.gmra.mrb[0].mxu0 %v538
  %v1227 = vpop.f32.mrb[0].mxu0
  %v1228 = vadd.f32 0.0, %v1227
  %v1229 = vpop.f32.mrb[0].mxu0
  %1230 = vmatprep.mubr.f32.mxu0 0.0
  %1231 = vmatmul.mubr.f32.gmra.mrb[0].mxu0 %v541
  %v1232 = vpop.f32.mrb[0].mxu0
  %v1233 = vadd.f32 0.0, %v1232
  %v1234 = vpop.f32.mrb[0].mxu0
  %1235 = vmatprep.mubr.f32.mxu0 0.0
  %1236 = vmatmul.mubr.f32.gmra.mrb[0].mxu0 %v544
  %v1237 = vpop.f32.mrb[0].mxu0
  %v1238 = vadd.f32 0.0, %v1237
  %v1239 = vpop.f32.mrb[0].mxu0
  %1240 = vmatprep.mubr.f32.mxu0 0.0
  %1241 = vmatmul.mubr.f32.gmra.mrb[0].mxu0 %v547
  %v1242 = vpop.f32.mrb[0].mxu0
  %v1243 = vadd.f32 0.0, %v1242
  %v1244 = vpop.f32.mrb[0].mxu0
  %1245 = vmatprep.mubr.f32.mxu0 0.0
  %1246 = vmatmul.mubr.f32.gmra.mrb[0].mxu0 %v550
  %v1247 = vpop.f32.mrb[0].mxu0
  %v1248 = vadd.f32 0.0, %v1247
  %v1249 = vpop.f32.mrb[0].mxu0
  %1250 = vmatprep.mubr.f32.mxu0 0.0
  %1251 = vmatmul.mubr.f32.gmra.mrb[0].mxu0 %v553
  %v1252 = vpop.f32.mrb[0].mxu0
  %v1253 = vadd.f32 0.0, %v1252
  %v1254 = vpop.f32.mrb[0].mxu0
  %1255 = vmatprep.mubr.f32.mxu0 0.0
  %1256 = vmatmul.mubr.f32.gmra.mrb[0].mxu0 %v556
  %v1257 = vpop.f32.mrb[0].mxu0
  %v1258 = vadd.f32 0.0, %v1257
  %v1259 = vpop.f32.mrb[0].mxu0
  %1260 = vmatprep.mubr.f32.mxu0 0.0
  %1261 = vmatmul.mubr.f32.gmra.mrb[0].mxu0 %v559
  %v1262 = vpop.f32.mrb[0].mxu0
  %v1263 = vadd.f32 0.0, %v1262
  %v1264 = vpop.f32.mrb[0].mxu0
  %1265 = vmatprep.mubr.f32.mxu0 0.0
  %1266 = vmatmul.mubr.f32.gmra.mrb[0].mxu0 %v562
  %v1267 = vpop.f32.mrb[0].mxu0
  %v1268 = vadd.f32 0.0, %v1267
  %v1269 = vpop.f32.mrb[0].mxu0
  %1270 = vmatprep.mubr.f32.mxu0 0.0
  %1271 = vmatmul.mubr.f32.gmra.mrb[0].mxu0 %v565
  %v1272 = vpop.f32.mrb[0].mxu0
  %v1273 = vadd.f32 0.0, %v1272
  %v1274 = vpop.f32.mrb[0].mxu0
  %1275 = vdwg.mxu0
  %v1276 = vmax.f32 %v638, 0.0
  %v1277 = vmax.f32 %v643, 0.0
  %v1278 = vmax.f32 %v648, 0.0
  %v1279 = vmax.f32 %v653, 0.0
  %v1280 = vmax.f32 %v658, 0.0
  %v1281 = vmax.f32 %v663, 0.0
  %v1282 = vmax.f32 %v668, 0.0
  %v1283 = vmax.f32 %v673, 0.0
  %v1284 = vmax.f32 %v678, 0.0
  %v1285 = vmax.f32 %v683, 0.0
  %v1286 = vmax.f32 %v688, 0.0
  %v1287 = vmax.f32 %v693, 0.0
  %v1288 = vmax.f32 %v698, 0.0
  %v1289 = vmax.f32 %v703, 0.0
  %v1290 = vmax.f32 %v708, 0.0
  %v1291 = vmax.f32 %v713, 0.0
  %v1292 = vmax.f32 %v718, 0.0
  %v1293 = vmax.f32 %v723, 0.0
  %v1294 = vmax.f32 %v728, 0.0
  %v1295 = vmax.f32 %v733, 0.0
  %v1296 = vmax.f32 %v738, 0.0
  %v1297 = vmax.f32 %v743, 0.0
  %v1298 = vmax.f32 %v748, 0.0
  %v1299 = vmax.f32 %v753, 0.0
  %v1300 = vmax.f32 %v758, 0.0
  %v1301 = vmax.f32 %v763, 0.0
  %v1302 = vmax.f32 %v768, 0.0
  %v1303 = vmax.f32 %v773, 0.0
  %v1304 = vmax.f32 %v778, 0.0
  %v1305 = vmax.f32 %v783, 0.0
  %v1306 = vmax.f32 %v788, 0.0
  %v1307 = vmax.f32 %v793, 0.0
  %v1308 = vmax.f32 %v798, 0.0
  %v1309 = vmax.f32 %v803, 0.0
  %v1310 = vmax.f32 %v808, 0.0
  %v1311 = vmax.f32 %v813, 0.0
  %v1312 = vmax.f32 %v818, 0.0
  %v1313 = vmax.f32 %v823, 0.0
  %v1314 = vmax.f32 %v828, 0.0
  %v1315 = vmax.f32 %v833, 0.0
  %v1316 = vmax.f32 %v838, 0.0
  %v1317 = vmax.f32 %v843, 0.0
  %v1318 = vmax.f32 %v848, 0.0
  %v1319 = vmax.f32 %v853, 0.0
  %v1320 = vmax.f32 %v858, 0.0
  %v1321 = vmax.f32 %v863, 0.0
  %v1322 = vmax.f32 %v868, 0.0
  %v1323 = vmax.f32 %v873, 0.0
  %v1324 = vmax.f32 %v878, 0.0
  %v1325 = vmax.f32 %v883, 0.0
  %v1326 = vmax.f32 %v888, 0.0
  %v1327 = vmax.f32 %v893, 0.0
  %v1328 = vmax.f32 %v898, 0.0
  %v1329 = vmax.f32 %v903, 0.0
  %v1330 = vmax.f32 %v908, 0.0
  %v1331 = vmax.f32 %v913, 0.0
  %v1332 = vmax.f32 %v918, 0.0
  %v1333 = vmax.f32 %v923, 0.0
  %v1334 = vmax.f32 %v928, 0.0
  %v1335 = vmax.f32 %v933, 0.0
  %v1336 = vmax.f32 %v938, 0.0
  %v1337 = vmax.f32 %v943, 0.0
  %v1338 = vmax.f32 %v948, 0.0
  %v1339 = vmax.f32 %v953, 0.0
  %v1340 = vmax.f32 %v958, 0.0
  %v1341 = vmax.f32 %v963, 0.0
  %v1342 = vmax.f32 %v968, 0.0
  %v1343 = vmax.f32 %v973, 0.0
  %v1344 = vmax.f32 %v978, 0.0
  %v1345 = vmax.f32 %v983, 0.0
  %v1346 = vmax.f32 %v988, 0.0
  %v1347 = vmax.f32 %v993, 0.0
  %v1348 = vmax.f32 %v998, 0.0
  %v1349 = vmax.f32 %v1003, 0.0
  %v1350 = vmax.f32 %v1008, 0.0
  %v1351 = vmax.f32 %v1013, 0.0
  %v1352 = vmax.f32 %v1018, 0.0
  %v1353 = vmax.f32 %v1023, 0.0
  %v1354 = vmax.f32 %v1028, 0.0
  %v1355 = vmax.f32 %v1033, 0.0
  %v1356 = vmax.f32 %v1038, 0.0
  %v1357 = vmax.f32 %v1043, 0.0
  %v1358 = vmax.f32 %v1048, 0.0
  %v1359 = vmax.f32 %v1053, 0.0
  %v1360 = vmax.f32 %v1058, 0.0
  %v1361 = vmax.f32 %v1063, 0.0
  %v1362 = vmax.f32 %v1068, 0.0
  %v1363 = vmax.f32 %v1073, 0.0
  %v1364 = vmax.f32 %v1078, 0.0
  %v1365 = vmax.f32 %v1083, 0.0
  %v1366 = vmax.f32 %v1088, 0.0
  %v1367 = vmax.f32 %v1093, 0.0
  %v1368 = vmax.f32 %v1098, 0.0
  %v1369 = vmax.f32 %v1103, 0.0
  %v1370 = vmax.f32 %v1108, 0.0
  %v1371 = vmax.f32 %v1113, 0.0
  %v1372 = vmax.f32 %v1118, 0.0
  %v1373 = vmax.f32 %v1123, 0.0
  %v1374 = vmax.f32 %v1128, 0.0
  %v1375 = vmax.f32 %v1133, 0.0
  %v1376 = vmax.f32 %v1138, 0.0
  %v1377 = vmax.f32 %v1143, 0.0
  %v1378 = vmax.f32 %v1148, 0.0
  %v1379 = vmax.f32 %v1153, 0.0
  %v1380 = vmax.f32 %v1158, 0.0
  %v1381 = vmax.f32 %v1163, 0.0
  %v1382 = vmax.f32 %v1168, 0.0
  %v1383 = vmax.f32 %v1173, 0.0
  %v1384 = vmax.f32 %v1178, 0.0
  %v1385 = vmax.f32 %v1183, 0.0
  %v1386 = vmax.f32 %v1188, 0.0
  %v1387 = vmax.f32 %v1193, 0.0
  %v1388 = vmax.f32 %v1198, 0.0
  %v1389 = vmax.f32 %v1203, 0.0
  %v1390 = vmax.f32 %v1208, 0.0
  %v1391 = vmax.f32 %v1213, 0.0
  %v1392 = vmax.f32 %v1218, 0.0
  %v1393 = vmax.f32 %v1223, 0.0
  %v1394 = vmax.f32 %v1228, 0.0
  %v1395 = vmax.f32 %v1233, 0.0
  %v1396 = vmax.f32 %v1238, 0.0
  %v1397 = vmax.f32 %v1243, 0.0
  %v1398 = vmax.f32 %v1248, 0.0
  %v1399 = vmax.f32 %v1253, 0.0
  %v1400 = vmax.f32 %v1258, 0.0
  %v1401 = vmax.f32 %v1263, 0.0
  %v1402 = vmax.f32 %v1268, 0.0
  %v1403 = vmax.f32 %v1273, 0.0
  %v1404 = vld [vmem:[%s2] sm:$0xff]
  %v1405 = vld [vmem:[%s2 + $0x8] sm:$0xff]
  %v1406 = vld [vmem:[%s2 + $0x10] sm:$0xff]
  %v1407 = vld [vmem:[%s2 + $0x18] sm:$0xff]
  %v1412 = vcombine.high %v1404, %v1404
  %v1413 = vcombine.high %v1405, %v1405
  %v1414 = vcombine.high %v1406, %v1406
  %v1415 = vcombine.high %v1407, %v1407
  %1420 = vmatprep.subr.mxu0 0.0
  %1421 = vmatpush1.msra.mxu0 %v1276
  %1422 = vmatprep.subr.mxu0 0.0
  %1423 = vmatpush1.msra.mxu0 %v1277
  %1424 = vmatprep.subr.mxu0 0.0
  %1425 = vmatpush1.msra.mxu0 %v1278
  %1426 = vmatprep.subr.mxu0 0.0
  %1427 = vmatpush1.msra.mxu0 %v1279
  %1428 = vmatprep.subr.mxu0 0.0
  %1429 = vmatpush1.msra.mxu0 %v1280
  %1430 = vmatprep.subr.mxu0 0.0
  %1431 = vmatpush1.msra.mxu0 %v1281
  %1432 = vmatprep.subr.mxu0 0.0
  %1433 = vmatpush1.msra.mxu0 %v1282
  %1434 = vmatprep.subr.mxu0 0.0
  %1435 = vmatpush1.msra.mxu0 %v1283
  %1436 = vmatprep.subr.mxu0 0.0
  %1437 = vmatpush1.msra.mxu0 %v1284
  %1438 = vmatprep.subr.mxu0 0.0
  %1439 = vmatpush1.msra.mxu0 %v1285
  %1440 = vmatprep.subr.mxu0 0.0
  %1441 = vmatpush1.msra.mxu0 %v1286
  %1442 = vmatprep.subr.mxu0 0.0
  %1443 = vmatpush1.msra.mxu0 %v1287
  %1444 = vmatprep.subr.mxu0 0.0
  %1445 = vmatpush1.msra.mxu0 %v1288
  %1446 = vmatprep.subr.mxu0 0.0
  %1447 = vmatpush1.msra.mxu0 %v1289
  %1448 = vmatprep.subr.mxu0 0.0
  %1449 = vmatpush1.msra.mxu0 %v1290
  %1450 = vmatprep.subr.mxu0 0.0
  %1451 = vmatpush1.msra.mxu0 %v1291
  %1452 = vmatprep.subr.mxu0 0.0
  %1453 = vmatpush1.msra.mxu0 %v1292
  %1454 = vmatprep.subr.mxu0 0.0
  %1455 = vmatpush1.msra.mxu0 %v1293
  %1456 = vmatprep.subr.mxu0 0.0
  %1457 = vmatpush1.msra.mxu0 %v1294
  %1458 = vmatprep.subr.mxu0 0.0
  %1459 = vmatpush1.msra.mxu0 %v1295
  %1460 = vmatprep.subr.mxu0 0.0
  %1461 = vmatpush1.msra.mxu0 %v1296
  %1462 = vmatprep.subr.mxu0 0.0
  %1463 = vmatpush1.msra.mxu0 %v1297
  %1464 = vmatprep.subr.mxu0 0.0
  %1465 = vmatpush1.msra.mxu0 %v1298
  %1466 = vmatprep.subr.mxu0 0.0
  %1467 = vmatpush1.msra.mxu0 %v1299
  %1468 = vmatprep.subr.mxu0 0.0
  %1469 = vmatpush1.msra.mxu0 %v1300
  %1470 = vmatprep.subr.mxu0 0.0
  %1471 = vmatpush1.msra.mxu0 %v1301
  %1472 = vmatprep.subr.mxu0 0.0
  %1473 = vmatpush1.msra.mxu0 %v1302
  %1474 = vmatprep.subr.mxu0 0.0
  %1475 = vmatpush1.msra.mxu0 %v1303
  %1476 = vmatprep.subr.mxu0 0.0
  %1477 = vmatpush1.msra.mxu0 %v1304
  %1478 = vmatprep.subr.mxu0 0.0
  %1479 = vmatpush1.msra.mxu0 %v1305
  %1480 = vmatprep.subr.mxu0 0.0
  %1481 = vmatpush1.msra.mxu0 %v1306
  %1482 = vmatprep.subr.mxu0 0.0
  %1483 = vmatpush1.msra.mxu0 %v1307
  %1484 = vmatprep.mubr.f32.mxu0 %v1412
  %1485 = vmatmul.mubr.f32.gmra.mrb[0].mxu0 %v1404
  %v1486 = vpop.f32.mrb[0].mxu0
  %v1487 = vadd.f32 0.0, %v1486
  %v1488 = vpop.f32.mrb[0].mxu0
  %1489 = vdwg.mxu0
  %1490 = vmatprep.subr.mxu0 0.0
  %1491 = vmatpush1.msra.mxu0 %v1308
  %1492 = vmatprep.subr.mxu0 0.0
  %1493 = vmatpush1.msra.mxu0 %v1309
  %1494 = vmatprep.subr.mxu0 0.0
  %1495 = vmatpush1.msra.mxu0 %v1310
  %1496 = vmatprep.subr.mxu0 0.0
  %1497 = vmatpush1.msra.mxu0 %v1311
  %1498 = vmatprep.subr.mxu0 0.0
  %1499 = vmatpush1.msra.mxu0 %v1312
  %1500 = vmatprep.subr.mxu0 0.0
  %1501 = vmatpush1.msra.mxu0 %v1313
  %1502 = vmatprep.subr.mxu0 0.0
  %1503 = vmatpush1.msra.mxu0 %v1314
  %1504 = vmatprep.subr.mxu0 0.0
  %1505 = vmatpush1.msra.mxu0 %v1315
  %1506 = vmatprep.subr.mxu0 0.0
  %1507 = vmatpush1.msra.mxu0 %v1316
  %1508 = vmatprep.subr.mxu0 0.0
  %1509 = vmatpush1.msra.mxu0 %v1317
  %1510 = vmatprep.subr.mxu0 0.0
  %1511 = vmatpush1.msra.mxu0 %v1318
  %1512 = vmatprep.subr.mxu0 0.0
  %1513 = vmatpush1.msra.mxu0 %v1319
  %1514 = vmatprep.subr.mxu0 0.0
  %1515 = vmatpush1.msra.mxu0 %v1320
  %1516 = vmatprep.subr.mxu0 0.0
  %1517 = vmatpush1.msra.mxu0 %v1321
  %1518 = vmatprep.subr.mxu0 0.0
  %1519 = vmatpush1.msra.mxu0 %v1322
  %1520 = vmatprep.subr.mxu0 0.0
  %1521 = vmatpush1.msra.mxu0 %v1323
  %1522 = vmatprep.subr.mxu0 0.0
  %1523 = vmatpush1.msra.mxu0 %v1324
  %1524 = vmatprep.subr.mxu0 0.0
  %1525 = vmatpush1.msra.mxu0 %v1325
  %1526 = vmatprep.subr.mxu0 0.0
  %1527 = vmatpush1.msra.mxu0 %v1326
  %1528 = vmatprep.subr.mxu0 0.0
  %1529 = vmatpush1.msra.mxu0 %v1327
  %1530 = vmatprep.subr.mxu0 0.0
  %1531 = vmatpush1.msra.mxu0 %v1328
  %1532 = vmatprep.subr.mxu0 0.0
  %1533 = vmatpush1.msra.mxu0 %v1329
  %1534 = vmatprep.subr.mxu0 0.0
  %1535 = vmatpush1.msra.mxu0 %v1330
  %1536 = vmatprep.subr.mxu0 0.0
  %1537 = vmatpush1.msra.mxu0 %v1331
  %1538 = vmatprep.subr.mxu0 0.0
  %1539 = vmatpush1.msra.mxu0 %v1332
  %1540 = vmatprep.subr.mxu0 0.0
  %1541 = vmatpush1.msra.mxu0 %v1333
  %1542 = vmatprep.subr.mxu0 0.0
  %1543 = vmatpush1.msra.mxu0 %v1334
  %1544 = vmatprep.subr.mxu0 0.0
  %1545 = vmatpush1.msra.mxu0 %v1335
  %1546 = vmatprep.subr.mxu0 0.0
  %1547 = vmatpush1.msra.mxu0 %v1336
  %1548 = vmatprep.subr.mxu0 0.0
  %1549 = vmatpush1.msra.mxu0 %v1337
  %1550 = vmatprep.subr.mxu0 0.0
  %1551 = vmatpush1.msra.mxu0 %v1338
  %1552 = vmatprep.subr.mxu0 0.0
  %1553 = vmatpush1.msra.mxu0 %v1339
  %1554 = vmatprep.mubr.f32.mxu0 %v1413
  %1555 = vmatmul.mubr.f32.gmra.mrb[0].mxu0 %v1405
  %v1556 = vpop.f32.mrb[0].mxu0
  %v1557 = vadd.f32 %v1487, %v1556
  %v1558 = vpop.f32.mrb[0].mxu0
  %1559 = vdwg.mxu0
  %1560 = vmatprep.subr.mxu0 0.0
  %1561 = vmatpush1.msra.mxu0 %v1340
  %1562 = vmatprep.subr.mxu0 0.0
  %1563 = vmatpush1.msra.mxu0 %v1341
  %1564 = vmatprep.subr.mxu0 0.0
  %1565 = vmatpush1.msra.mxu0 %v1342
  %1566 = vmatprep.subr.mxu0 0.0
  %1567 = vmatpush1.msra.mxu0 %v1343
  %1568 = vmatprep.subr.mxu0 0.0
  %1569 = vmatpush1.msra.mxu0 %v1344
  %1570 = vmatprep.subr.mxu0 0.0
  %1571 = vmatpush1.msra.mxu0 %v1345
  %1572 = vmatprep.subr.mxu0 0.0
  %1573 = vmatpush1.msra.mxu0 %v1346
  %1574 = vmatprep.subr.mxu0 0.0
  %1575 = vmatpush1.msra.mxu0 %v1347
  %1576 = vmatprep.subr.mxu0 0.0
  %1577 = vmatpush1.msra.mxu0 %v1348
  %1578 = vmatprep.subr.mxu0 0.0
  %1579 = vmatpush1.msra.mxu0 %v1349
  %1580 = vmatprep.subr.mxu0 0.0
  %1581 = vmatpush1.msra.mxu0 %v1350
  %1582 = vmatprep.subr.mxu0 0.0
  %1583 = vmatpush1.msra.mxu0 %v1351
  %1584 = vmatprep.subr.mxu0 0.0
  %1585 = vmatpush1.msra.mxu0 %v1352
  %1586 = vmatprep.subr.mxu0 0.0
  %1587 = vmatpush1.msra.mxu0 %v1353
  %1588 = vmatprep.subr.mxu0 0.0
  %1589 = vmatpush1.msra.mxu0 %v1354
  %1590 = vmatprep.subr.mxu0 0.0
  %1591 = vmatpush1.msra.mxu0 %v1355
  %1592 = vmatprep.subr.mxu0 0.0
  %1593 = vmatpush1.msra.mxu0 %v1356
  %1594 = vmatprep.subr.mxu0 0.0
  %1595 = vmatpush1.msra.mxu0 %v1357
  %1596 = vmatprep.subr.mxu0 0.0
  %1597 = vmatpush1.msra.mxu0 %v1358
  %1598 = vmatprep.subr.mxu0 0.0
  %1599 = vmatpush1.msra.mxu0 %v1359
  %1600 = vmatprep.subr.mxu0 0.0
  %1601 = vmatpush1.msra.mxu0 %v1360
  %1602 = vmatprep.subr.mxu0 0.0
  %1603 = vmatpush1.msra.mxu0 %v1361
  %1604 = vmatprep.subr.mxu0 0.0
  %1605 = vmatpush1.msra.mxu0 %v1362
  %1606 = vmatprep.subr.mxu0 0.0
  %1607 = vmatpush1.msra.mxu0 %v1363
  %1608 = vmatprep.subr.mxu0 0.0
  %1609 = vmatpush1.msra.mxu0 %v1364
  %1610 = vmatprep.subr.mxu0 0.0
  %1611 = vmatpush1.msra.mxu0 %v1365
  %1612 = vmatprep.subr.mxu0 0.0
  %1613 = vmatpush1.msra.mxu0 %v1366
  %1614 = vmatprep.subr.mxu0 0.0
  %1615 = vmatpush1.msra.mxu0 %v1367
  %1616 = vmatprep.subr.mxu0 0.0
  %1617 = vmatpush1.msra.mxu0 %v1368
  %1618 = vmatprep.subr.mxu0 0.0
  %1619 = vmatpush1.msra.mxu0 %v1369
  %1620 = vmatprep.subr.mxu0 0.0
  %1621 = vmatpush1.msra.mxu0 %v1370
  %1622 = vmatprep.subr.mxu0 0.0
  %1623 = vmatpush1.msra.mxu0 %v1371
  %1624 = vmatprep.mubr.f32.mxu0 %v1414
  %1625 = vmatmul.mubr.f32.gmra.mrb[0].mxu0 %v1406
  %v1626 = vpop.f32.mrb[0].mxu0
  %v1627 = vadd.f32 %v1557, %v1626
  %v1628 = vpop.f32.mrb[0].mxu0
  %1629 = vdwg.mxu0
  %1630 = vmatprep.subr.mxu0 0.0
  %1631 = vmatpush1.msra.mxu0 %v1372
  %1632 = vmatprep.subr.mxu0 0.0
  %1633 = vmatpush1.msra.mxu0 %v1373
  %1634 = vmatprep.subr.mxu0 0.0
  %1635 = vmatpush1.msra.mxu0 %v1374
  %1636 = vmatprep.subr.mxu0 0.0
  %1637 = vmatpush1.msra.mxu0 %v1375
  %1638 = vmatprep.subr.mxu0 0.0
  %1639 = vmatpush1.msra.mxu0 %v1376
  %1640 = vmatprep.subr.mxu0 0.0
  %1641 = vmatpush1.msra.mxu0 %v1377
  %1642 = vmatprep.subr.mxu0 0.0
  %1643 = vmatpush1.msra.mxu0 %v1378
  %1644 = vmatprep.subr.mxu0 0.0
  %1645 = vmatpush1.msra.mxu0 %v1379
  %1646 = vmatprep.subr.mxu0 0.0
  %1647 = vmatpush1.msra.mxu0 %v1380
  %1648 = vmatprep.subr.mxu0 0.0
  %1649 = vmatpush1.msra.mxu0 %v1381
  %1650 = vmatprep.subr.mxu0 0.0
  %1651 = vmatpush1.msra.mxu0 %v1382
  %1652 = vmatprep.subr.mxu0 0.0
  %1653 = vmatpush1.msra.mxu0 %v1383
  %1654 = vmatprep.subr.mxu0 0.0
  %1655 = vmatpush1.msra.mxu0 %v1384
  %1656 = vmatprep.subr.mxu0 0.0
  %1657 = vmatpush1.msra.mxu0 %v1385
  %1658 = vmatprep.subr.mxu0 0.0
  %1659 = vmatpush1.msra.mxu0 %v1386
  %1660 = vmatprep.subr.mxu0 0.0
  %1661 = vmatpush1.msra.mxu0 %v1387
  %1662 = vmatprep.subr.mxu0 0.0
  %1663 = vmatpush1.msra.mxu0 %v1388
  %1664 = vmatprep.subr.mxu0 0.0
  %1665 = vmatpush1.msra.mxu0 %v1389
  %1666 = vmatprep.subr.mxu0 0.0
  %1667 = vmatpush1.msra.mxu0 %v1390
  %1668 = vmatprep.subr.mxu0 0.0
  %1669 = vmatpush1.msra.mxu0 %v1391
  %1670 = vmatprep.subr.mxu0 0.0
  %1671 = vmatpush1.msra.mxu0 %v1392
  %1672 = vmatprep.subr.mxu0 0.0
  %1673 = vmatpush1.msra.mxu0 %v1393
  %1674 = vmatprep.subr.mxu0 0.0
  %1675 = vmatpush1.msra.mxu0 %v1394
  %1676 = vmatprep.subr.mxu0 0.0
  %1677 = vmatpush1.msra.mxu0 %v1395
  %1678 = vmatprep.subr.mxu0 0.0
  %1679 = vmatpush1.msra.mxu0 %v1396
  %1680 = vmatprep.subr.mxu0 0.0
  %1681 = vmatpush1.msra.mxu0 %v1397
  %1682 = vmatprep.subr.mxu0 0.0
  %1683 = vmatpush1.msra.mxu0 %v1398
  %1684 = vmatprep.subr.mxu0 0.0
  %1685 = vmatpush1.msra.mxu0 %v1399
  %1686 = vmatprep.subr.mxu0 0.0
  %1687 = vmatpush1.msra.mxu0 %v1400
  %1688 = vmatprep.subr.mxu0 0.0
  %1689 = vmatpush1.msra.mxu0 %v1401
  %1690 = vmatprep.subr.mxu0 0.0
  %1691 = vmatpush1.msra.mxu0 %v1402
  %1692 = vmatprep.subr.mxu0 0.0
  %1693 = vmatpush1.msra.mxu0 %v1403
  %1694 = vmatprep.mubr.f32.mxu0 %v1415
  %1695 = vmatmul.mubr.f32.gmra.mrb[0].mxu0 %v1407
  %v1696 = vpop.f32.mrb[0].mxu0
  %v1697 = vadd.f32 %v1627, %v1696
  %v1698 = vpop.f32.mrb[0].mxu0
  %1699 = vdwg.mxu0
  %v1700 = vld [vmem:[%s3] sm:$0xf]
  %v1701 = vld [vmem:[%s4] sm:$0xff]
  %v1702 = vld [vmem:[%s4 + $0x8] sm:$0xff]
  %v1703 = vld [vmem:[%s4 + $0x10] sm:$0xff]
  %v1704 = vld [vmem:[%s4 + $0x18] sm:$0xff]
  %vm1705 = vcmask 261120
  %v1707 = vsel %vm1705, %v1697, 0
  %1709 = vmatprep.subr.mxu0 0.0
  %1710 = vmatpush1.msra.mxu0 %v1701
  %1711 = vmatprep.subr.mxu0 0.0
  %1712 = vmatpush1.msra.mxu0 %v1702
  %1713 = vmatprep.subr.mxu0 0.0
  %1714 = vmatpush1.msra.mxu0 %v1703
  %1715 = vmatprep.subr.mxu0 0.0
  %1716 = vmatpush1.msra.mxu0 %v1704
  %1717 = vmatprep.subr.mxu0 0.0
  %1718 = vmatpush1.msra.mxu0 0.0
  %1719 = vmatprep.subr.mxu0 0.0
  %1720 = vmatpush1.msra.mxu0 0.0
  %1721 = vmatprep.subr.mxu0 0.0
  %1722 = vmatpush1.msra.mxu0 0.0
  %1723 = vmatprep.subr.mxu0 0.0
  %1724 = vmatpush1.msra.mxu0 0.0
  %1725 = vmatprep.subr.mxu0 0.0
  %1726 = vmatpush1.msra.mxu0 0.0
  %1727 = vmatprep.subr.mxu0 0.0
  %1728 = vmatpush1.msra.mxu0 0.0
  %1729 = vmatprep.subr.mxu0 0.0
  %1730 = vmatpush1.msra.mxu0 0.0
  %1731 = vmatprep.subr.mxu0 0.0
  %1732 = vmatpush1.msra.mxu0 0.0
  %1733 = vmatprep.subr.mxu0 0.0
  %1734 = vmatpush1.msra.mxu0 0.0
  %1735 = vmatprep.subr.mxu0 0.0
  %1736 = vmatpush1.msra.mxu0 0.0
  %1737 = vmatprep.subr.mxu0 0.0
  %1738 = vmatpush1.msra.mxu0 0.0
  %1739 = vmatprep.subr.mxu0 0.0
  %1740 = vmatpush1.msra.mxu0 0.0
  %1741 = vmatprep.subr.mxu0 0.0
  %1742 = vmatpush1.msra.mxu0 0.0
  %1743 = vmatprep.subr.mxu0 0.0
  %1744 = vmatpush1.msra.mxu0 0.0
  %1745 = vmatprep.subr.mxu0 0.0
  %1746 = vmatpush1.msra.mxu0 0.0
  %1747 = vmatprep.subr.mxu0 0.0
  %1748 = vmatpush1.msra.mxu0 0.0
  %1749 = vmatprep.subr.mxu0 0.0
  %1750 = vmatpush1.msra.mxu0 0.0
  %1751 = vmatprep.subr.mxu0 0.0
  %1752 = vmatpush1.msra.mxu0 0.0
  %1753 = vmatprep.subr.mxu0 0.0
  %1754 = vmatpush1.msra.mxu0 0.0
  %1755 = vmatprep.subr.mxu0 0.0
  %1756 = vmatpush1.msra.mxu0 0.0
  %1757 = vmatprep.subr.mxu0 0.0
  %1758 = vmatpush1.msra.mxu0 0.0
  %1759 = vmatprep.subr.mxu0 0.0
  %1760 = vmatpush1.msra.mxu0 0.0
  %1761 = vmatprep.subr.mxu0 0.0
  %1762 = vmatpush1.msra.mxu0 0.0
  %1763 = vmatprep.subr.mxu0 0.0
  %1764 = vmatpush1.msra.mxu0 0.0
  %1765 = vmatprep.subr.mxu0 0.0
  %1766 = vmatpush1.msra.mxu0 0.0
  %1767 = vmatprep.subr.mxu0 0.0
  %1768 = vmatpush1.msra.mxu0 0.0
  %1769 = vmatprep.subr.mxu0 0.0
  %1770 = vmatpush1.msra.mxu0 0.0
  %1771 = vmatprep.subr.mxu0 0.0
  %1772 = vmatpush1.msra.mxu0 0.0
  %1773 = vmatprep.mubr.f32.mxu0 0.0
  %1774 = vmatmul.mubr.f32.gmra.mrb[0].mxu0 %v1707
  %v1775 = vpop.f32.mrb[0].mxu0
  %v1776 = vadd.f32 0.0, %v1775
  %v1777 = vpop.f32.mrb[0].mxu0
  %1778 = vdwg.mxu0
  %v1779 = vld [vmem:[%s5] sm:$0x1]
  %v1780 = vld [vmem:[%s6] sm:$0x1]
  %vm1781 = vcmask 31744
  %v1783 = vsel %vm1781, %v1700, 0
  %v1786 = vsel %vm567, %v1776, 0
  %1788 = vmatprep.subr.mxu0 0.0
  %1789 = vmatpush1.msra.mxu0 %v1786
  %1790 = vmatprep.subr.mxu0 0.0
  %1791 = vmatpush1.msra.mxu0 0.0
  %1792 = vmatprep.subr.mxu0 0.0
  %1793 = vmatpush1.msra.mxu0 0.0
  %1794 = vmatprep.subr.mxu0 0.0
  %1795 = vmatpush1.msra.mxu0 0.0
  %1796 = vmatprep.subr.mxu0 0.0
  %1797 = vmatpush1.msra.mxu0 0.0
  %1798 = vmatprep.subr.mxu0 0.0
  %1799 = vmatpush1.msra.mxu0 0.0
  %1800 = vmatprep.subr.mxu0 0.0
  %1801 = vmatpush1.msra.mxu0 0.0
  %1802 = vmatprep.subr.mxu0 0.0
  %1803 = vmatpush1.msra.mxu0 0.0
  %1804 = vmatprep.subr.mxu0 0.0
  %1805 = vmatpush1.msra.mxu0 0.0
  %1806 = vmatprep.subr.mxu0 0.0
  %1807 = vmatpush1.msra.mxu0 0.0
  %1808 = vmatprep.subr.mxu0 0.0
  %1809 = vmatpush1.msra.mxu0 0.0
  %1810 = vmatprep.subr.mxu0 0.0
  %1811 = vmatpush1.msra.mxu0 0.0
  %1812 = vmatprep.subr.mxu0 0.0
  %1813 = vmatpush1.msra.mxu0 0.0
  %1814 = vmatprep.subr.mxu0 0.0
  %1815 = vmatpush1.msra.mxu0 0.0
  %1816 = vmatprep.subr.mxu0 0.0
  %1817 = vmatpush1.msra.mxu0 0.0
  %1818 = vmatprep.subr.mxu0 0.0
  %1819 = vmatpush1.msra.mxu0 0.0
  %1820 = vmatprep.subr.mxu0 0.0
  %1821 = vmatpush1.msra.mxu0 0.0
  %1822 = vmatprep.subr.mxu0 0.0
  %1823 = vmatpush1.msra.mxu0 0.0
  %1824 = vmatprep.subr.mxu0 0.0
  %1825 = vmatpush1.msra.mxu0 0.0
  %1826 = vmatprep.subr.mxu0 0.0
  %1827 = vmatpush1.msra.mxu0 0.0
  %1828 = vmatprep.subr.mxu0 0.0
  %1829 = vmatpush1.msra.mxu0 0.0
  %1830 = vmatprep.subr.mxu0 0.0
  %1831 = vmatpush1.msra.mxu0 0.0
  %1832 = vmatprep.subr.mxu0 0.0
  %1833 = vmatpush1.msra.mxu0 0.0
  %1834 = vmatprep.subr.mxu0 0.0
  %1835 = vmatpush1.msra.mxu0 0.0
  %1836 = vmatprep.subr.mxu0 0.0
  %1837 = vmatpush1.msra.mxu0 0.0
  %1838 = vmatprep.subr.mxu0 0.0
  %1839 = vmatpush1.msra.mxu0 0.0
  %1840 = vmatprep.subr.mxu0 0.0
  %1841 = vmatpush1.msra.mxu0 0.0
  %1842 = vmatprep.subr.mxu0 0.0
  %1843 = vmatpush1.msra.mxu0 0.0
  %1844 = vmatprep.subr.mxu0 0.0
  %1845 = vmatpush1.msra.mxu0 0.0
  %1846 = vmatprep.subr.mxu0 0.0
  %1847 = vmatpush1.msra.mxu0 0.0
  %1848 = vmatprep.subr.mxu0 0.0
  %1849 = vmatpush1.msra.mxu0 0.0
  %1850 = vmatprep.subr.mxu0 0.0
  %1851 = vmatpush1.msra.mxu0 0.0
  %1852 = vmatprep.mubr.f32.mxu0 0.0
  %1853 = vmatmul.mubr.f32.gmra.mrb[0].mxu0 %v1783
  %v1854 = vpop.f32.mrb[0].mxu0
  %v1855 = vadd.f32 0.0, %v1854
  %v1856 = vpop.f32.mrb[0].mxu0
  %1857 = vdwg.mxu0
  %v1858 = vsub.f32 %v1776, %v1855
  %v1859 = vmul.f32 %v1858, %v1858
  %v1861 = vsel %vm567, %v1859, 0
  %1863 = vmatprep.subr.mxu0 0.0
  %1864 = vmatpush1.msra.mxu0 %v1861
  %1865 = vmatprep.subr.mxu0 0.0
  %1866 = vmatpush1.msra.mxu0 0.0
  %1867 = vmatprep.subr.mxu0 0.0
  %1868 = vmatpush1.msra.mxu0 0.0
  %1869 = vmatprep.subr.mxu0 0.0
  %1870 = vmatpush1.msra.mxu0 0.0
  %1871 = vmatprep.subr.mxu0 0.0
  %1872 = vmatpush1.msra.mxu0 0.0
  %1873 = vmatprep.subr.mxu0 0.0
  %1874 = vmatpush1.msra.mxu0 0.0
  %1875 = vmatprep.subr.mxu0 0.0
  %1876 = vmatpush1.msra.mxu0 0.0
  %1877 = vmatprep.subr.mxu0 0.0
  %1878 = vmatpush1.msra.mxu0 0.0
  %1879 = vmatprep.subr.mxu0 0.0
  %1880 = vmatpush1.msra.mxu0 0.0
  %1881 = vmatprep.subr.mxu0 0.0
  %1882 = vmatpush1.msra.mxu0 0.0
  %1883 = vmatprep.subr.mxu0 0.0
  %1884 = vmatpush1.msra.mxu0 0.0
  %1885 = vmatprep.subr.mxu0 0.0
  %1886 = vmatpush1.msra.mxu0 0.0
  %1887 = vmatprep.subr.mxu0 0.0
  %1888 = vmatpush1.msra.mxu0 0.0
  %1889 = vmatprep.subr.mxu0 0.0
  %1890 = vmatpush1.msra.mxu0 0.0
  %1891 = vmatprep.subr.mxu0 0.0
  %1892 = vmatpush1.msra.mxu0 0.0
  %1893 = vmatprep.subr.mxu0 0.0
  %1894 = vmatpush1.msra.mxu0 0.0
  %1895 = vmatprep.subr.mxu0 0.0
  %1896 = vmatpush1.msra.mxu0 0.0
  %1897 = vmatprep.subr.mxu0 0.0
  %1898 = vmatpush1.msra.mxu0 0.0
  %1899 = vmatprep.subr.mxu0 0.0
  %1900 = vmatpush1.msra.mxu0 0.0
  %1901 = vmatprep.subr.mxu0 0.0
  %1902 = vmatpush1.msra.mxu0 0.0
  %1903 = vmatprep.subr.mxu0 0.0
  %1904 = vmatpush1.msra.mxu0 0.0
  %1905 = vmatprep.subr.mxu0 0.0
  %1906 = vmatpush1.msra.mxu0 0.0
  %1907 = vmatprep.subr.mxu0 0.0
  %1908 = vmatpush1.msra.mxu0 0.0
  %1909 = vmatprep.subr.mxu0 0.0
  %1910 = vmatpush1.msra.mxu0 0.0
  %1911 = vmatprep.subr.mxu0 0.0
  %1912 = vmatpush1.msra.mxu0 0.0
  %1913 = vmatprep.subr.mxu0 0.0
  %1914 = vmatpush1.msra.mxu0 0.0
  %1915 = vmatprep.subr.mxu0 0.0
  %1916 = vmatpush1.msra.mxu0 0.0
  %1917 = vmatprep.subr.mxu0 0.0
  %1918 = vmatpush1.msra.mxu0 0.0
  %1919 = vmatprep.subr.mxu0 0.0
  %1920 = vmatpush1.msra.mxu0 0.0
  %1921 = vmatprep.subr.mxu0 0.0
  %1922 = vmatpush1.msra.mxu0 0.0
  %1923 = vmatprep.subr.mxu0 0.0
  %1924 = vmatpush1.msra.mxu0 0.0
  %1925 = vmatprep.subr.mxu0 0.0
  %1926 = vmatpush1.msra.mxu0 0.0
  %1927 = vmatprep.mubr.f32.mxu0 0.0
  %1928 = vmatmul.mubr.f32.gmra.mrb[0].mxu0 %v1783
  %v1929 = vpop.f32.mrb[0].mxu0
  %v1930 = vadd.f32 1e-05, %v1929
  %v1931 = vpop.f32.mrb[0].mxu0
  %1932 = vdwg.mxu0
  %v1933 = vrsqrt.pop %v1930
  %v1934 = vmul.f32 %v1858, %v1933
  %v1936 = vlaneseq
  %v1937 = vshrl.u32 %v1936, 7
  %v1938 = vsub.s32 0, %v1937
  %v1939 = vrot.slane %v1779, %v1938
  %v1941 = vmul.f32 %v1934, %v1939
  %v1943 = vlaneseq
  %v1944 = vshrl.u32 %v1943, 7
  %v1945 = vsub.s32 0, %v1944
  %v1946 = vrot.slane %v1780, %v1945
  %v1948 = vadd.f32 %v1941, %v1946
  %v1949 = vmax.f32 %v1948, 0.0
  %v1950 = vld [vmem:[%s7] sm:$0x1]
  %v1952 = vlaneseq
  %v1953 = vshrl.u32 %v1952, 7
  %v1954 = vsub.s32 0, %v1953
  %v1955 = vrot.slane %v1950, %v1954
  %v1957 = vsub.f32 %v1776, %v1955
  %v1958 = vld [vmem:[%s8] sm:$0x1]
  %v1959 = vadd.f32 %v1958, 1e-05
  %v1960 = vrsqrt.pop %v1959
  %v1962 = vlaneseq
  %v1963 = vshrl.u32 %v1962, 7
  %v1964 = vsub.s32 0, %v1963
  %v1965 = vrot.slane %v1960, %v1964
  %v1967 = vmul.f32 %v1957, %v1965
  %v1968 = vmul.f32 %v1967, %v1939
  %v1969 = vadd.f32 %v1968, %v1946
  %v1970 = vmax.f32 %v1969, 0.0
  %v1972 = vrot.slane %v1970, 4
  %v1974 = vsel %vm567, %v1949, %v1972
  %v1975 = vld [vmem:[%s9] sm:$0xff]
  %v1976 = vld [vmem:[%s9 + $0x8] sm:$0xff]
  %v1977 = vld [vmem:[%s9 + $0x10] sm:$0xff]
  %v1978 = vld [vmem:[%s9 + $0x18] sm:$0xff]
  %v1979 = vld [vmem:[%s9 + $0x20] sm:$0xff]
  %v1980 = vld [vmem:[%s9 + $0x28] sm:$0xff]
  %v1981 = vld [vmem:[%s9 + $0x30] sm:$0xff]
  %v1982 = vld [vmem:[%s9 + $0x38] sm:$0xff]
  %vm1983 = vcmask 523264
  %v1985 = vsel %vm1983, %v1974, 0
  %1987 = vmatprep.subr.mxu0 0.0
  %1988 = vmatpush1.msra.mxu0 %v1975
  %1989 = vmatprep.subr.mxu0 0.0
  %1990 = vmatpush1.msra.mxu0 %v1976
  %1991 = vmatprep.subr.mxu0 0.0
  %1992 = vmatpush1.msra.mxu0 %v1977
  %1993 = vmatprep.subr.mxu0 0.0
  %1994 = vmatpush1.msra.mxu0 %v1978
  %1995 = vmatprep.subr.mxu0 0.0
  %1996 = vmatpush1.msra.mxu0 %v1979
  %1997 = vmatprep.subr.mxu0 0.0
  %1998 = vmatpush1.msra.mxu0 %v1980
  %1999 = vmatprep.subr.mxu0 0.0
  %2000 = vmatpush1.msra.mxu0 %v1981
  %2001 = vmatprep.subr.mxu0 0.0
  %2002 = vmatpush1.msra.mxu0 %v1982
  %2003 = vmatprep.subr.mxu0 0.0
  %2004 = vmatpush1.msra.mxu0 0.0
  %2005 = vmatprep.subr.mxu0 0.0
  %2006 = vmatpush1.msra.mxu0 0.0
  %2007 = vmatprep.subr.mxu0 0.0
  %2008 = vmatpush1.msra.mxu0 0.0
  %2009 = vmatprep.subr.mxu0 0.0
  %2010 = vmatpush1.msra.mxu0 0.0
  %2011 = vmatprep.subr.mxu0 0.0
  %2012 = vmatpush1.msra.mxu0 0.0
  %2013 = vmatprep.subr.mxu0 0.0
  %2014 = vmatpush1.msra.mxu0 0.0
  %2015 = vmatprep.subr.mxu0 0.0
  %2016 = vmatpush1.msra.mxu0 0.0
  %2017 = vmatprep.subr.mxu0 0.0
  %2018 = vmatpush1.msra.mxu0 0.0
  %2019 = vmatprep.subr.mxu0 0.0
  %2020 = vmatpush1.msra.mxu0 0.0
  %2021 = vmatprep.subr.mxu0 0.0
  %2022 = vmatpush1.msra.mxu0 0.0
  %2023 = vmatprep.subr.mxu0 0.0
  %2024 = vmatpush1.msra.mxu0 0.0
  %2025 = vmatprep.subr.mxu0 0.0
  %2026 = vmatpush1.msra.mxu0 0.0
  %2027 = vmatprep.subr.mxu0 0.0
  %2028 = vmatpush1.msra.mxu0 0.0
  %2029 = vmatprep.subr.mxu0 0.0
  %2030 = vmatpush1.msra.mxu0 0.0
  %2031 = vmatprep.subr.mxu0 0.0
  %2032 = vmatpush1.msra.mxu0 0.0
  %2033 = vmatprep.subr.mxu0 0.0
  %2034 = vmatpush1.msra.mxu0 0.0
  %2035 = vmatprep.subr.mxu0 0.0
  %2036 = vmatpush1.msra.mxu0 0.0
  %2037 = vmatprep.subr.mxu0 0.0
  %2038 = vmatpush1.msra.mxu0 0.0
  %2039 = vmatprep.subr.mxu0 0.0
  %2040 = vmatpush1.msra.mxu0 0.0
  %2041 = vmatprep.subr.mxu0 0.0
  %2042 = vmatpush1.msra.mxu0 0.0
  %2043 = vmatprep.subr.mxu0 0.0
  %2044 = vmatpush1.msra.mxu0 0.0
  %2045 = vmatprep.subr.mxu0 0.0
  %2046 = vmatpush1.msra.mxu0 0.0
  %2047 = vmatprep.subr.mxu0 0.0
  %2048 = vmatpush1.msra.mxu0 0.0
  %2049 = vmatprep.subr.mxu0 0.0
  %2050 = vmatpush1.msra.mxu0 0.0
  %2051 = vmatprep.mubr.f32.mxu0 0.0
  %2052 = vmatmul.mubr.f32.gmra.mrb[0].mxu0 %v1985
  %v2053 = vpop.f32.mrb[0].mxu0
  %v2054 = vadd.f32 0.0, %v2053
  %v2055 = vpop.f32.mrb[0].mxu0
  %2056 = vdwg.mxu0
  %v2057 = vld [vmem:[%s10] sm:$0xff]
  %v2058 = vld [vmem:[%s10 + $0x8] sm:$0xff]
  %v2059 = vld [vmem:[%s10 + $0x10] sm:$0xff]
  %v2060 = vld [vmem:[%s10 + $0x18] sm:$0xff]
  %v2062 = vsel %vm1705, %v2054, 0
  %2064 = vmatprep.subr.mxu0 0.0
  %2065 = vmatpush1.msra.mxu0 %v2057
  %2066 = vmatprep.subr.mxu0 0.0
  %2067 = vmatpush1.msra.mxu0 %v2058
  %2068 = vmatprep.subr.mxu0 0.0
  %2069 = vmatpush1.msra.mxu0 %v2059
  %2070 = vmatprep.subr.mxu0 0.0
  %2071 = vmatpush1.msra.mxu0 %v2060
  %2072 = vmatprep.subr.mxu0 0.0
  %2073 = vmatpush1.msra.mxu0 0.0
  %2074 = vmatprep.subr.mxu0 0.0
  %2075 = vmatpush1.msra.mxu0 0.0
  %2076 = vmatprep.subr.mxu0 0.0
  %2077 = vmatpush1.msra.mxu0 0.0
  %2078 = vmatprep.subr.mxu0 0.0
  %2079 = vmatpush1.msra.mxu0 0.0
  %2080 = vmatprep.subr.mxu0 0.0
  %2081 = vmatpush1.msra.mxu0 0.0
  %2082 = vmatprep.subr.mxu0 0.0
  %2083 = vmatpush1.msra.mxu0 0.0
  %2084 = vmatprep.subr.mxu0 0.0
  %2085 = vmatpush1.msra.mxu0 0.0
  %2086 = vmatprep.subr.mxu0 0.0
  %2087 = vmatpush1.msra.mxu0 0.0
  %2088 = vmatprep.subr.mxu0 0.0
  %2089 = vmatpush1.msra.mxu0 0.0
  %2090 = vmatprep.subr.mxu0 0.0
  %2091 = vmatpush1.msra.mxu0 0.0
  %2092 = vmatprep.subr.mxu0 0.0
  %2093 = vmatpush1.msra.mxu0 0.0
  %2094 = vmatprep.subr.mxu0 0.0
  %2095 = vmatpush1.msra.mxu0 0.0
  %2096 = vmatprep.subr.mxu0 0.0
  %2097 = vmatpush1.msra.mxu0 0.0
  %2098 = vmatprep.subr.mxu0 0.0
  %2099 = vmatpush1.msra.mxu0 0.0
  %2100 = vmatprep.subr.mxu0 0.0
  %2101 = vmatpush1.msra.mxu0 0.0
  %2102 = vmatprep.subr.mxu0 0.0
  %2103 = vmatpush1.msra.mxu0 0.0
  %2104 = vmatprep.subr.mxu0 0.0
  %2105 = vmatpush1.msra.mxu0 0.0
  %2106 = vmatprep.subr.mxu0 0.0
  %2107 = vmatpush1.msra.mxu0 0.0
  %2108 = vmatprep.subr.mxu0 0.0
  %2109 = vmatpush1.msra.mxu0 0.0
  %2110 = vmatprep.subr.mxu0 0.0
  %2111 = vmatpush1.msra.mxu0 0.0
  %2112 = vmatprep.subr.mxu0 0.0
  %2113 = vmatpush1.msra.mxu0 0.0
  %2114 = vmatprep.subr.mxu0 0.0
  %2115 = vmatpush1.msra.mxu0 0.0
  %2116 = vmatprep.subr.mxu0 0.0
  %2117 = vmatpush1.msra.mxu0 0.0
  %2118 = vmatprep.subr.mxu0 0.0
  %2119 = vmatpush1.msra.mxu0 0.0
  %2120 = vmatprep.subr.mxu0 0.0
  %2121 = vmatpush1.msra.mxu0 0.0
  %2122 = vmatprep.subr.mxu0 0.0
  %2123 = vmatpush1.msra.mxu0 0.0
  %2124 = vmatprep.subr.mxu0 0.0
  %2125 = vmatpush1.msra.mxu0 0.0
  %2126 = vmatprep.subr.mxu0 0.0
  %2127 = vmatpush1.msra.mxu0 0.0
  %2128 = vmatprep.mubr.f32.mxu0 0.0
  %2129 = vmatmul.mubr.f32.gmra.mrb[0].mxu0 %v2062
  %v2130 = vpop.f32.mrb[0].mxu0
  %v2131 = vadd.f32 0.0, %v2130
  %v2132 = vpop.f32.mrb[0].mxu0
  %2133 = vdwg.mxu0
  %v2134 = vld [vmem:[%s11] sm:$0x1]
  %v2135 = vld [vmem:[%s12] sm:$0x1]
  %v2137 = vsel %vm567, %v2131, 0
  %2139 = vmatprep.subr.mxu0 0.0
  %2140 = vmatpush1.msra.mxu0 %v2137
  %2141 = vmatprep.subr.mxu0 0.0
  %2142 = vmatpush1.msra.mxu0 0.0
  %2143 = vmatprep.subr.mxu0 0.0
  %2144 = vmatpush1.msra.mxu0 0.0
  %2145 = vmatprep.subr.mxu0 0.0
  %2146 = vmatpush1.msra.mxu0 0.0
  %2147 = vmatprep.subr.mxu0 0.0
  %2148 = vmatpush1.msra.mxu0 0.0
  %2149 = vmatprep.subr.mxu0 0.0
  %2150 = vmatpush1.msra.mxu0 0.0
  %2151 = vmatprep.subr.mxu0 0.0
  %2152 = vmatpush1.msra.mxu0 0.0
  %2153 = vmatprep.subr.mxu0 0.0
  %2154 = vmatpush1.msra.mxu0 0.0
  %2155 = vmatprep.subr.mxu0 0.0
  %2156 = vmatpush1.msra.mxu0 0.0
  %2157 = vmatprep.subr.mxu0 0.0
  %2158 = vmatpush1.msra.mxu0 0.0
  %2159 = vmatprep.subr.mxu0 0.0
  %2160 = vmatpush1.msra.mxu0 0.0
  %2161 = vmatprep.subr.mxu0 0.0
  %2162 = vmatpush1.msra.mxu0 0.0
  %2163 = vmatprep.subr.mxu0 0.0
  %2164 = vmatpush1.msra.mxu0 0.0
  %2165 = vmatprep.subr.mxu0 0.0
  %2166 = vmatpush1.msra.mxu0 0.0
  %2167 = vmatprep.subr.mxu0 0.0
  %2168 = vmatpush1.msra.mxu0 0.0
  %2169 = vmatprep.subr.mxu0 0.0
  %2170 = vmatpush1.msra.mxu0 0.0
  %2171 = vmatprep.subr.mxu0 0.0
  %2172 = vmatpush1.msra.mxu0 0.0
  %2173 = vmatprep.subr.mxu0 0.0
  %2174 = vmatpush1.msra.mxu0 0.0
  %2175 = vmatprep.subr.mxu0 0.0
  %2176 = vmatpush1.msra.mxu0 0.0
  %2177 = vmatprep.subr.mxu0 0.0
  %2178 = vmatpush1.msra.mxu0 0.0
  %2179 = vmatprep.subr.mxu0 0.0
  %2180 = vmatpush1.msra.mxu0 0.0
  %2181 = vmatprep.subr.mxu0 0.0
  %2182 = vmatpush1.msra.mxu0 0.0
  %2183 = vmatprep.subr.mxu0 0.0
  %2184 = vmatpush1.msra.mxu0 0.0
  %2185 = vmatprep.subr.mxu0 0.0
  %2186 = vmatpush1.msra.mxu0 0.0
  %2187 = vmatprep.subr.mxu0 0.0
  %2188 = vmatpush1.msra.mxu0 0.0
  %2189 = vmatprep.subr.mxu0 0.0
  %2190 = vmatpush1.msra.mxu0 0.0
  %2191 = vmatprep.subr.mxu0 0.0
  %2192 = vmatpush1.msra.mxu0 0.0
  %2193 = vmatprep.subr.mxu0 0.0
  %2194 = vmatpush1.msra.mxu0 0.0
  %2195 = vmatprep.subr.mxu0 0.0
  %2196 = vmatpush1.msra.mxu0 0.0
  %2197 = vmatprep.subr.mxu0 0.0
  %2198 = vmatpush1.msra.mxu0 0.0
  %2199 = vmatprep.subr.mxu0 0.0
  %2200 = vmatpush1.msra.mxu0 0.0
  %2201 = vmatprep.subr.mxu0 0.0
  %2202 = vmatpush1.msra.mxu0 0.0
  %2203 = vmatprep.mubr.f32.mxu0 0.0
  %2204 = vmatmul.mubr.f32.gmra.mrb[0].mxu0 %v1783
  %v2205 = vpop.f32.mrb[0].mxu0
  %v2206 = vadd.f32 0.0, %v2205
  %v2207 = vpop.f32.mrb[0].mxu0
  %2208 = vdwg.mxu0
  %v2209 = vsub.f32 %v2131, %v2206
  %v2210 = vmul.f32 %v2209, %v2209
  %v2212 = vsel %vm567, %v2210, 0
  %2214 = vmatprep.subr.mxu0 0.0
  %2215 = vmatpush1.msra.mxu0 %v2212
  %2216 = vmatprep.subr.mxu0 0.0
  %2217 = vmatpush1.msra.mxu0 0.0
  %2218 = vmatprep.subr.mxu0 0.0
  %2219 = vmatpush1.msra.mxu0 0.0
  %2220 = vmatprep.subr.mxu0 0.0
  %2221 = vmatpush1.msra.mxu0 0.0
  %2222 = vmatprep.subr.mxu0 0.0
  %2223 = vmatpush1.msra.mxu0 0.0
  %2224 = vmatprep.subr.mxu0 0.0
  %2225 = vmatpush1.msra.mxu0 0.0
  %2226 = vmatprep.subr.mxu0 0.0
  %2227 = vmatpush1.msra.mxu0 0.0
  %2228 = vmatprep.subr.mxu0 0.0
  %2229 = vmatpush1.msra.mxu0 0.0
  %2230 = vmatprep.subr.mxu0 0.0
  %2231 = vmatpush1.msra.mxu0 0.0
  %2232 = vmatprep.subr.mxu0 0.0
  %2233 = vmatpush1.msra.mxu0 0.0
  %2234 = vmatprep.subr.mxu0 0.0
  %2235 = vmatpush1.msra.mxu0 0.0
  %2236 = vmatprep.subr.mxu0 0.0
  %2237 = vmatpush1.msra.mxu0 0.0
  %2238 = vmatprep.subr.mxu0 0.0
  %2239 = vmatpush1.msra.mxu0 0.0
  %2240 = vmatprep.subr.mxu0 0.0
  %2241 = vmatpush1.msra.mxu0 0.0
  %2242 = vmatprep.subr.mxu0 0.0
  %2243 = vmatpush1.msra.mxu0 0.0
  %2244 = vmatprep.subr.mxu0 0.0
  %2245 = vmatpush1.msra.mxu0 0.0
  %2246 = vmatprep.subr.mxu0 0.0
  %2247 = vmatpush1.msra.mxu0 0.0
  %2248 = vmatprep.subr.mxu0 0.0
  %2249 = vmatpush1.msra.mxu0 0.0
  %2250 = vmatprep.subr.mxu0 0.0
  %2251 = vmatpush1.msra.mxu0 0.0
  %2252 = vmatprep.subr.mxu0 0.0
  %2253 = vmatpush1.msra.mxu0 0.0
  %2254 = vmatprep.subr.mxu0 0.0
  %2255 = vmatpush1.msra.mxu0 0.0
  %2256 = vmatprep.subr.mxu0 0.0
  %2257 = vmatpush1.msra.mxu0 0.0
  %2258 = vmatprep.subr.mxu0 0.0
  %2259 = vmatpush1.msra.mxu0 0.0
  %2260 = vmatprep.subr.mxu0 0.0
  %2261 = vmatpush1.msra.mxu0 0.0
  %2262 = vmatprep.subr.mxu0 0.0
  %2263 = vmatpush1.msra.mxu0 0.0
  %2264 = vmatprep.subr.mxu0 0.0
  %2265 = vmatpush1.msra.mxu0 0.0
  %2266 = vmatprep.subr.mxu0 0.0
  %2267 = vmatpush1.msra.mxu0 0.0
  %2268 = vmatprep.subr.mxu0 0.0
  %2269 = vmatpush1.msra.mxu0 0.0
  %2270 = vmatprep.subr.mxu0 0.0
  %2271 = vmatpush1.msra.mxu0 0.0
  %2272 = vmatprep.subr.mxu0 0.0
  %2273 = vmatpush1.msra.mxu0 0.0
  %2274 = vmatprep.subr.mxu0 0.0
  %2275 = vmatpush1.msra.mxu0 0.0
  %2276 = vmatprep.subr.mxu0 0.0
  %2277 = vmatpush1.msra.mxu0 0.0
  %2278 = vmatprep.mubr.f32.mxu0 0.0
  %2279 = vmatmul.mubr.f32.gmra.mrb[0].mxu0 %v1783
  %v2280 = vpop.f32.mrb[0].mxu0
  %v2281 = vadd.f32 1e-05, %v2280
  %v2282 = vpop.f32.mrb[0].mxu0
  %2283 = vdwg.mxu0
  %v2284 = vrsqrt.pop %v2281
  %v2285 = vmul.f32 %v2209, %v2284
  %v2287 = vlaneseq
  %v2288 = vshrl.u32 %v2287, 7
  %v2289 = vsub.s32 0, %v2288
  %v2290 = vrot.slane %v2134, %v2289
  %v2292 = vmul.f32 %v2285, %v2290
  %v2294 = vlaneseq
  %v2295 = vshrl.u32 %v2294, 7
  %v2296 = vsub.s32 0, %v2295
  %v2297 = vrot.slane %v2135, %v2296
  %v2299 = vadd.f32 %v2292, %v2297
  %v2300 = vmax.f32 %v2299, 0.0
  %v2301 = vld [vmem:[%s13] sm:$0xff]
  %v2302 = vld [vmem:[%s13 + $0x8] sm:$0xff]
  %v2303 = vld [vmem:[%s13 + $0x10] sm:$0xff]
  %v2304 = vld [vmem:[%s13 + $0x18] sm:$0xff]
  %v2305 = vld [vmem:[%s13 + $0x20] sm:$0xff]
  %v2306 = vld [vmem:[%s13 + $0x28] sm:$0xff]
  %v2307 = vld [vmem:[%s13 + $0x30] sm:$0xff]
  %v2308 = vld [vmem:[%s13 + $0x38] sm:$0xff]
  %v2310 = vsel %vm1983, %v2300, 0
  %2312 = vmatprep.subr.mxu0 0.0
  %2313 = vmatpush1.msra.mxu0 %v2301
  %2314 = vmatprep.subr.mxu0 0.0
  %2315 = vmatpush1.msra.mxu0 %v2302
  %2316 = vmatprep.subr.mxu0 0.0
  %2317 = vmatpush1.msra.mxu0 %v2303
  %2318 = vmatprep.subr.mxu0 0.0
  %2319 = vmatpush1.msra.mxu0 %v2304
  %2320 = vmatprep.subr.mxu0 0.0
  %2321 = vmatpush1.msra.mxu0 %v2305
  %2322 = vmatprep.subr.mxu0 0.0
  %2323 = vmatpush1.msra.mxu0 %v2306
  %2324 = vmatprep.subr.mxu0 0.0
  %2325 = vmatpush1.msra.mxu0 %v2307
  %2326 = vmatprep.subr.mxu0 0.0
  %2327 = vmatpush1.msra.mxu0 %v2308
  %2328 = vmatprep.subr.mxu0 0.0
  %2329 = vmatpush1.msra.mxu0 0.0
  %2330 = vmatprep.subr.mxu0 0.0
  %2331 = vmatpush1.msra.mxu0 0.0
  %2332 = vmatprep.subr.mxu0 0.0
  %2333 = vmatpush1.msra.mxu0 0.0
  %2334 = vmatprep.subr.mxu0 0.0
  %2335 = vmatpush1.msra.mxu0 0.0
  %2336 = vmatprep.subr.mxu0 0.0
  %2337 = vmatpush1.msra.mxu0 0.0
  %2338 = vmatprep.subr.mxu0 0.0
  %2339 = vmatpush1.msra.mxu0 0.0
  %2340 = vmatprep.subr.mxu0 0.0
  %2341 = vmatpush1.msra.mxu0 0.0
  %2342 = vmatprep.subr.mxu0 0.0
  %2343 = vmatpush1.msra.mxu0 0.0
  %2344 = vmatprep.subr.mxu0 0.0
  %2345 = vmatpush1.msra.mxu0 0.0
  %2346 = vmatprep.subr.mxu0 0.0
  %2347 = vmatpush1.msra.mxu0 0.0
  %2348 = vmatprep.subr.mxu0 0.0
  %2349 = vmatpush1.msra.mxu0 0.0
  %2350 = vmatprep.subr.mxu0 0.0
  %2351 = vmatpush1.msra.mxu0 0.0
  %2352 = vmatprep.subr.mxu0 0.0
  %2353 = vmatpush1.msra.mxu0 0.0
  %2354 = vmatprep.subr.mxu0 0.0
  %2355 = vmatpush1.msra.mxu0 0.0
  %2356 = vmatprep.subr.mxu0 0.0
  %2357 = vmatpush1.msra.mxu0 0.0
  %2358 = vmatprep.subr.mxu0 0.0
  %2359 = vmatpush1.msra.mxu0 0.0
  %2360 = vmatprep.subr.mxu0 0.0
  %2361 = vmatpush1.msra.mxu0 0.0
  %2362 = vmatprep.subr.mxu0 0.0
  %2363 = vmatpush1.msra.mxu0 0.0
  %2364 = vmatprep.subr.mxu0 0.0
  %2365 = vmatpush1.msra.mxu0 0.0
  %2366 = vmatprep.subr.mxu0 0.0
  %2367 = vmatpush1.msra.mxu0 0.0
  %2368 = vmatprep.subr.mxu0 0.0
  %2369 = vmatpush1.msra.mxu0 0.0
  %2370 = vmatprep.subr.mxu0 0.0
  %2371 = vmatpush1.msra.mxu0 0.0
  %2372 = vmatprep.subr.mxu0 0.0
  %2373 = vmatpush1.msra.mxu0 0.0
  %2374 = vmatprep.subr.mxu0 0.0
  %2375 = vmatpush1.msra.mxu0 0.0
  %2376 = vmatprep.mubr.f32.mxu0 0.0
  %2377 = vmatmul.mubr.f32.gmra.mrb[0].mxu0 %v2310
  %v2378 = vpop.f32.mrb[0].mxu0
  %v2379 = vadd.f32 0.0, %v2378
  %v2380 = vpop.f32.mrb[0].mxu0
  %2381 = vdwg.mxu0
  %v2382 = vmul.f32 %v2379, %v2379
  %vm2383 = vcmask 257024
  %v2384 = vsel %vm2383, %v2382, 0.0
  %2385 = vadd.xlane.f32.xlu0 %v2384
  %v2386 = vpop.xlane.xlu0 %2385
  %v2387 = vmax.f32 %v2386, 1e-24
  %v2388 = vrsqrt.pop %v2387
  %v2389 = vmul.f32 %v2379, %v2388
  %v2390 = vmul.f32 %v2054, %v2054
  %vm2391 = vcmask 261124
  %v2392 = vsel %vm2391, %v2390, 0.0
  %2393 = vadd.xlane.f32.xlu0 %v2392
  %v2394 = vpop.xlane.xlu0 %2393
  %v2395 = vmax.f32 %v2394, 1e-24
  %v2396 = vrsqrt.pop %v2395
  %v2397 = vmul.f32 %v2054, %v2396
  %2398 = vst.msk [vmem:[%s14] sm:$0xf] %vm2383, %v2389
  %2399 = vst.msk [vmem:[%s15 - $0x4] sm:$0xf0] %vm2391, %v2397
  // Predicated region
  $region58: #{byol_forward.1} parent=0 // pred_check
    _
  $region59: #{byol_forward.1} parent=0 // pred_check_branch
    %2401 = sbr.rel (0) target = $region61
  $region60: #{byol_forward.1} parent=0 // pred_region
    _
  $region61: #{byol_forward.1} parent=0 // pred_fallthru
    _
  // Predicated region
  $region62: #{byol_forward.1} parent=0 // pred_check
    _
  $region63: #{byol_forward.1} parent=0 // pred_check_branch
    %2403 = sbr.rel (0) target = $region65
  $region64: #{byol_forward.1} parent=0 // pred_region
    _
  $region65: #{byol_forward.1} parent=0 // pred_fallthru
    _
  // Predicated region
  $region66: #{byol_forward.1} parent=0 // pred_check
    _
  $region67: #{byol_forward.1} parent=0 // pred_check_branch
    %2405 = sbr.rel (0) target = $region69
  $region68: #{byol_forward.1} parent=0 // pred_region
    _
  $region69: #{byol_forward.1} parent=0 // pred_fallthru
    _
  // Predicated region
  $region70: #{byol_forward.1} parent=0 // pred_check
    _
  $region71: #{byol_forward.1} parent=0 // pred_check_branch
    %2407 = sbr.rel (0) target = $region73
  $region72: #{byol_forward.1} parent=0 // pred_region
    _
  $region73: #{byol_forward.1} parent=0 // pred_fallthru
    _

</llo_original>
